<compile_context>
chip_gen: v7x
topology: tpu7x:2x2x1
jax: 0.10.0
libtpu: 0.0.40
codegen_flags: <defaults>
</compile_context>

<pallas_src>
import functools
import math

import jax
import jax.numpy as jnp
from jax import lax
from jax.experimental import pallas as pl
from jax.experimental.pallas import tpu as pltpu


def _layernorm_f32(x, gamma, beta, eps=1e-5):
    mu = jnp.mean(x, axis=-1, keepdims=True)
    xc = x - mu
    var = jnp.mean(xc * xc, axis=-1, keepdims=True)
    return xc * lax.rsqrt(var + eps) * gamma + beta


def _encoder_layer_kernel(
    x_ref, mask_ref,
    wqkv_ref, bqkv_ref, wo_ref, bo_ref, g1_ref, b1_ref,
    w1_ref, w2_ref, g2_ref, b2_ref,
    o_ref,
    *, n_heads, d_k, d_v,
):
    x_bf = x_ref[0]                                  # (S, d_model) bf16
    x_f32 = x_bf.astype(jnp.float32)                 # residual in f32

    # ---- fused QKV projection: one bf16 MXU matmul, f32 accumulate --------
    qkv = jnp.dot(x_bf, wqkv_ref[...], preferred_element_type=jnp.float32)
    qkv = qkv + bqkv_ref[...]

    hk = n_heads * d_k
    hv = n_heads * d_v
    # 128-lane-aligned slices (hk, hv, d_k, d_v all multiples of 128 here).
    q = qkv[:, :hk].astype(jnp.bfloat16)
    k = qkv[:, hk:2 * hk].astype(jnp.bfloat16)
    v = qkv[:, 2 * hk:2 * hk + hv].astype(jnp.bfloat16)

    # mask: nonzero == masked out; compare int8 directly (no f32 widening).
    is_masked = mask_ref[0] != 0                     # (S, S) bool

    scale = jnp.float32(1.0 / math.sqrt(d_k))
    neg_big = jnp.float32(-1000000000.0)

    ctx_heads = []
    for h in range(n_heads):                         # small static unroll
        qh = q[:, h * d_k:(h + 1) * d_k]             # aligned -> view
        kh = k[:, h * d_k:(h + 1) * d_k]
        vh = v[:, h * d_v:(h + 1) * d_v]

        # scores = Q @ K^T / sqrt(d_k); contract LAST dims (no K transpose).
        s = lax.dot_general(qh, kh, (((1,), (1,)), ((), ())),
                            preferred_element_type=jnp.float32) * scale
        s = jnp.where(is_masked, neg_big, s)         # masked_fill_(-1e9)

        # numerically-stable softmax (f32), approx reciprocal on the EUP.
        s = s - jnp.max(s, axis=-1, keepdims=True)
        p = jnp.exp(s)
        denom = jnp.sum(p, axis=-1, keepdims=True)
        attn = p * pl.reciprocal(denom, approx=True)

        ctx_heads.append(
            jnp.dot(attn.astype(jnp.bfloat16), vh,
                    preferred_element_type=jnp.float32).astype(jnp.bfloat16))

    # Single wide output projection over the concatenated heads.
    ctx = jnp.concatenate(ctx_heads, axis=-1) if n_heads > 1 else ctx_heads[0]
    attn_out = jnp.dot(ctx, wo_ref[...], preferred_element_type=jnp.float32)
    attn_out = attn_out + bo_ref[...]

    y1 = _layernorm_f32(attn_out + x_f32, g1_ref[...], b1_ref[...])   # res 1

    # ---- position-wise FFN + residual + LayerNorm --------------------------
    h1 = jnp.maximum(
        jnp.dot(y1.astype(jnp.bfloat16), w1_ref[...],
                preferred_element_type=jnp.float32), 0.0)
    ffn = jnp.dot(h1.astype(jnp.bfloat16), w2_ref[...],
                  preferred_element_type=jnp.float32)
    y2 = _layernorm_f32(ffn + y1, g2_ref[...], b2_ref[...])           # res 2

    o_ref[0] = y2.astype(o_ref.dtype)


def encoder_layer(x, attn_mask, params, *, n_heads, d_k, d_v):
    """x: [B, S, d_model] f32;  attn_mask: [B, S, S] bool (True == masked)."""
    B, S, d_model = x.shape
    d_ff = params["w1"].shape[1]
    hk, hv = n_heads * d_k, n_heads * d_v
    bf16 = jnp.bfloat16

    # Pack Q/K/V projections into one fused weight; cast weights to bf16,
    # keep biases / LN params in f32 (tiny, added after the f32 accumulate).
    wqkv = jnp.concatenate(
        [params["wq"], params["wk"], params["wv"]], axis=1).astype(bf16)
    bqkv = jnp.concatenate(
        [params["bq"], params["bk"], params["bv"]])[None, :].astype(jnp.float32)
    wo = params["wo"].astype(bf16)
    w1 = params["w1"].astype(bf16)
    w2 = params["w2"].astype(bf16)

    x_bf = x.astype(bf16)                 # halve the x DMA / VMEM footprint
    mask_i8 = attn_mask.astype(jnp.int8)  # shrink the only S^2-scaling DMA

    row = lambda a: a.reshape(1, -1).astype(jnp.float32)

    def full(shape):                      # constant-index -> VMEM-resident
        return pl.BlockSpec(shape, lambda b, _n=len(shape): (0,) * _n)

    kernel = functools.partial(
        _encoder_layer_kernel, n_heads=n_heads, d_k=d_k, d_v=d_v)

    # Advisory cost estimate so XLA schedules around the custom call.
    flops = B * (2 * S * d_model * (2 * hk + hv)      # QKV projection
                 + 2 * S * S * (hk + hv)              # scores + context
                 + 2 * S * hv * d_model               # output projection
                 + 4 * S * d_model * d_ff)            # FFN (two matmuls)
    transcendentals = B * (n_heads * S * S + 2 * S)
    bytes_accessed = (2 * B * S * d_model             # x (bf16)
                      + B * S * S                     # mask (int8)
                      + 4 * B * S * d_model           # out (f32)
                      + 2 * (wqkv.size + wo.size + w1.size + w2.size)
                      + 4 * (bqkv.size + 5 * d_model))

    out = pl.pallas_call(
        kernel,
        out_shape=jax.ShapeDtypeStruct((B, S, d_model), x.dtype),
        grid_spec=pltpu.PrefetchScalarGridSpec(
            num_scalar_prefetch=0,
            grid=(B,),
            in_specs=[
                pl.BlockSpec((1, S, d_model), lambda b: (b, 0, 0)),   # x (bf16)
                pl.BlockSpec((1, S, S), lambda b: (b, 0, 0)),         # mask (i8)
                full(wqkv.shape),                                     # W_QKV
                full((1, 2 * hk + hv)),                               # b_QKV
                full(wo.shape),                                       # W_O
                full((1, d_model)),                                   # b_O
                full((1, d_model)),                                   # ln1 gamma
                full((1, d_model)),                                   # ln1 beta
                full(w1.shape),                                       # FFN W1
                full(w2.shape),                                       # FFN W2
                full((1, d_model)),                                   # ln2 gamma
                full((1, d_model)),                                   # ln2 beta
            ],
            out_specs=pl.BlockSpec((1, S, d_model), lambda b: (b, 0, 0)),
        ),
        compiler_params=pltpu.CompilerParams(
            dimension_semantics=("parallel",),        # batch over TCs on v7x
            vmem_limit_bytes=48 * 1024 * 1024,        # headroom; < v7x 64 MiB
        ),
        cost_estimate=pl.CostEstimate(
            flops=flops, transcendentals=transcendentals,
            bytes_accessed=bytes_accessed),
    )(
        x_bf, mask_i8,
        wqkv, bqkv,
        wo, row(params["bo"]),
        row(params["ln1_g"]), row(params["ln1_b"]),
        w1, w2,
        row(params["ln2_g"]), row(params["ln2_b"]),
    )
    return out


def _reference(x, attn_mask, params, *, n_heads, d_k, d_v, eps=1e-5):
    """Pure-JAX f32 mirror of the PyTorch EncoderLayer forward."""
    B, S, d_model = x.shape

    def ln(z, g, b):
        mu = jnp.mean(z, axis=-1, keepdims=True)
        zc = z - mu
        var = jnp.mean(zc * zc, axis=-1, keepdims=True)
        return zc * lax.rsqrt(var + eps) * g + b

    q = (x @ params["wq"] + params["bq"]).reshape(B, S, n_heads, d_k).transpose(0, 2, 1, 3)
    k = (x @ params["wk"] + params["bk"]).reshape(B, S, n_heads, d_k).transpose(0, 2, 1, 3)
    v = (x @ params["wv"] + params["bv"]).reshape(B, S, n_heads, d_v).transpose(0, 2, 1, 3)

    scores = jnp.einsum("bhqd,bhkd->bhqk", q, k) / math.sqrt(d_k)
    scores = jnp.where(attn_mask[:, None, :, :], -1000000000.0, scores)
    attn = jax.nn.softmax(scores, axis=-1)
    ctx = jnp.einsum("bhqk,bhkd->bhqd", attn, v)
    ctx = ctx.transpose(0, 2, 1, 3).reshape(B, S, n_heads * d_v)

    mha = ctx @ params["wo"] + params["bo"]
    y1 = ln(mha + x, params["ln1_g"], params["ln1_b"])

    ffn = jnp.maximum(y1 @ params["w1"], 0.0) @ params["w2"]
    return ln(ffn + y1, params["ln2_g"], params["ln2_b"])


if __name__ == "__main__":
    # TPU-friendly small shapes: d_model multiple of 128 (lane-dense output),
    # head dim = 128 so per-head slices are lane-tile aligned.
    B, S = 2, 16
    d_model, n_heads, d_k, d_v, d_ff = 256, 2, 128, 128, 512

    key = jax.random.PRNGKey(0)
    keys = jax.random.split(key, 16)
    init = lambda k, shape, s=0.1: s * jax.random.normal(k, shape, dtype=jnp.float32)

    params = {
        "wq": init(keys[0], (d_model, n_heads * d_k)),
        "bq": init(keys[1], (n_heads * d_k,)),
        "wk": init(keys[2], (d_model, n_heads * d_k)),
        "bk": init(keys[3], (n_heads * d_k,)),
        "wv": init(keys[4], (d_model, n_heads * d_v)),
        "bv": init(keys[5], (n_heads * d_v,)),
        "wo": init(keys[6], (n_heads * d_v, d_model)),
        "bo": init(keys[7], (d_model,)),
        "ln1_g": 1.0 + init(keys[8], (d_model,)),
        "ln1_b": init(keys[9], (d_model,)),
        "w1": init(keys[10], (d_model, d_ff)),
        "w2": init(keys[11], (d_ff, d_model)),
        "ln2_g": 1.0 + init(keys[12], (d_model,)),
        "ln2_b": init(keys[13], (d_model,)),
    }

    x = jax.random.normal(keys[14], (B, S, d_model), dtype=jnp.float32)
    attn_mask = jax.random.uniform(keys[15], (B, S, S)) < 0.2   # True == masked

    out = encoder_layer(x, attn_mask, params, n_heads=n_heads, d_k=d_k, d_v=d_v)
    out = jax.block_until_ready(out)

    ref = _reference(x, attn_mask, params, n_heads=n_heads, d_k=d_k, d_v=d_v)
    assert out.shape == (B, S, d_model)
    max_err = float(jnp.max(jnp.abs(out - ref)))
    # bf16 matmul operands (f32 accumulation) -> loosened tolerance vs f32 ref.
    assert jnp.allclose(out, ref, atol=5e-2, rtol=5e-2), (
        f"mismatch vs reference (max abs err {max_err})")

    print("KERNEL_OK")
</pallas_src>

<mosaic_0001>
module attributes {stable_mosaic.version = 11 : i64} {
  func.func @_encoder_layer_kernel(%arg0: i32, %arg1: memref<1x16x256xbf16, #tpu.memory_space<vmem>>, %arg2: memref<1x16x16xi8, #tpu.memory_space<vmem>>, %arg3: memref<256x768xbf16, #tpu.memory_space<vmem>>, %arg4: memref<1x768xf32, #tpu.memory_space<vmem>>, %arg5: memref<256x256xbf16, #tpu.memory_space<vmem>>, %arg6: memref<1x256xf32, #tpu.memory_space<vmem>>, %arg7: memref<1x256xf32, #tpu.memory_space<vmem>>, %arg8: memref<1x256xf32, #tpu.memory_space<vmem>>, %arg9: memref<256x512xbf16, #tpu.memory_space<vmem>>, %arg10: memref<512x256xbf16, #tpu.memory_space<vmem>>, %arg11: memref<1x256xf32, #tpu.memory_space<vmem>>, %arg12: memref<1x256xf32, #tpu.memory_space<vmem>>, %arg13: memref<1x16x256xf32, #tpu.memory_space<vmem>>) attributes {dimension_semantics = [#tpu.dimension_semantics<parallel>], iteration_bounds = array<i64: 2>, scalar_prefetch = 0 : i64, scratch_operands = 0 : i64, tpu.core_type = #tpu.core_type<tc>, window_params = [{transform_indices = @transform_0, window_bounds = array<i64: 1, 16, 256>}, {transform_indices = @transform_1, window_bounds = array<i64: 1, 16, 16>}, {pipeline_mode = #tpu.pipeline_mode<synchronous>, transform_indices = @transform_2, window_bounds = array<i64: 256, 768>}, {pipeline_mode = #tpu.pipeline_mode<synchronous>, transform_indices = @transform_3, window_bounds = array<i64: 1, 768>}, {pipeline_mode = #tpu.pipeline_mode<synchronous>, transform_indices = @transform_4, window_bounds = array<i64: 256, 256>}, {pipeline_mode = #tpu.pipeline_mode<synchronous>, transform_indices = @transform_5, window_bounds = array<i64: 1, 256>}, {pipeline_mode = #tpu.pipeline_mode<synchronous>, transform_indices = @transform_6, window_bounds = array<i64: 1, 256>}, {pipeline_mode = #tpu.pipeline_mode<synchronous>, transform_indices = @transform_7, window_bounds = array<i64: 1, 256>}, {pipeline_mode = #tpu.pipeline_mode<synchronous>, transform_indices = @transform_8, window_bounds = array<i64: 256, 512>}, {pipeline_mode = #tpu.pipeline_mode<synchronous>, transform_indices = @transform_9, window_bounds = array<i64: 512, 256>}, {pipeline_mode = #tpu.pipeline_mode<synchronous>, transform_indices = @transform_10, window_bounds = array<i64: 1, 256>}, {pipeline_mode = #tpu.pipeline_mode<synchronous>, transform_indices = @transform_11, window_bounds = array<i64: 1, 256>}, {transform_indices = @transform_12, window_bounds = array<i64: 1, 16, 256>}]} {
    %c0 = arith.constant 0 : index
    %c0_0 = arith.constant 0 : index
    %c0_1 = arith.constant 0 : index
    %0 = vector.load %arg1[%c0, %c0_0, %c0_1] : memref<1x16x256xbf16, #tpu.memory_space<vmem>>, vector<1x16x256xbf16>
    %1 = vector.shape_cast %0 : vector<1x16x256xbf16> to vector<16x256xbf16>
    %2 = arith.extf %1 : vector<16x256xbf16> to vector<16x256xf32>
    %c0_2 = arith.constant 0 : index
    %c0_3 = arith.constant 0 : index
    %3 = vector.load %arg3[%c0_2, %c0_3] : memref<256x768xbf16, #tpu.memory_space<vmem>>, vector<256x768xbf16>
    %cst = arith.constant dense<0.000000e+00> : vector<16x768xf32>
    %4 = tpu.matmul %1, %3, %cst {dimension_numbers = #tpu.dot_dimension_numbers<[1], [0], [0], [1], [0, 0, 1, 1], [], []>} : vector<16x256xbf16>, vector<256x768xbf16>, vector<16x768xf32> -> vector<16x768xf32>
    %c0_4 = arith.constant 0 : index
    %c0_5 = arith.constant 0 : index
    %5 = vector.load %arg4[%c0_4, %c0_5] : memref<1x768xf32, #tpu.memory_space<vmem>>, vector<1x768xf32>
    %6 = vector.broadcast %5 : vector<1x768xf32> to vector<16x768xf32>
    %7 = arith.addf %4, %6 : vector<16x768xf32>
    %8 = vector.extract_strided_slice %7 {offsets = [0, 0], sizes = [16, 256], strides = [1, 1]} : vector<16x768xf32> to vector<16x256xf32>
    %9 = arith.truncf %8 : vector<16x256xf32> to vector<16x256xbf16>
    %10 = vector.extract_strided_slice %7 {offsets = [0, 256], sizes = [16, 256], strides = [1, 1]} : vector<16x768xf32> to vector<16x256xf32>
    %11 = arith.truncf %10 : vector<16x256xf32> to vector<16x256xbf16>
    %12 = vector.extract_strided_slice %7 {offsets = [0, 512], sizes = [16, 256], strides = [1, 1]} : vector<16x768xf32> to vector<16x256xf32>
    %13 = arith.truncf %12 : vector<16x256xf32> to vector<16x256xbf16>
    %c0_6 = arith.constant 0 : index
    %c0_7 = arith.constant 0 : index
    %c0_8 = arith.constant 0 : index
    %14 = vector.load %arg2[%c0_6, %c0_7, %c0_8] : memref<1x16x16xi8, #tpu.memory_space<vmem>>, vector<1x16x16xi8>
    %15 = vector.shape_cast %14 : vector<1x16x16xi8> to vector<16x16xi8>
    %c0_i8 = arith.constant 0 : i8
    %16 = vector.broadcast %c0_i8 : i8 to vector<16x16xi8>
    %17 = arith.cmpi ne, %15, %16 : vector<16x16xi8>
    %18 = vector.extract_strided_slice %9 {offsets = [0, 0], sizes = [16, 128], strides = [1, 1]} : vector<16x256xbf16> to vector<16x128xbf16>
    %19 = vector.extract_strided_slice %11 {offsets = [0, 0], sizes = [16, 128], strides = [1, 1]} : vector<16x256xbf16> to vector<16x128xbf16>
    %20 = vector.extract_strided_slice %13 {offsets = [0, 0], sizes = [16, 128], strides = [1, 1]} : vector<16x256xbf16> to vector<16x128xbf16>
    %cst_9 = arith.constant dense<0.000000e+00> : vector<16x16xf32>
    %21 = tpu.matmul %18, %19, %cst_9 {dimension_numbers = #tpu.dot_dimension_numbers<[1], [1], [0], [0], [0, 0, 1, 0], [], []>} : vector<16x128xbf16>, vector<16x128xbf16>, vector<16x16xf32> -> vector<16x16xf32>
    %cst_10 = arith.constant 0.0883883461 : f32
    %22 = vector.broadcast %cst_10 : f32 to vector<16x16xf32>
    %23 = arith.mulf %21, %22 : vector<16x16xf32>
    %cst_11 = arith.constant -1.000000e+09 : f32
    %24 = vector.broadcast %cst_11 : f32 to vector<16x16xf32>
    %25 = arith.select %17, %24, %23 : vector<16x16xi1>, vector<16x16xf32>
    %cst_12 = arith.constant dense<0xFF800000> : vector<16xf32>
    %26 = vector.multi_reduction <maximumf>, %25, %cst_12 [1] : vector<16x16xf32> to vector<16xf32>
    %27 = vector.shape_cast %26 : vector<16xf32> to vector<16x1xf32>
    %28 = vector.broadcast %27 : vector<16x1xf32> to vector<16x16xf32>
    %29 = arith.subf %25, %28 : vector<16x16xf32>
    %30 = math.exp %29 : vector<16x16xf32>
    %cst_13 = arith.constant dense<0.000000e+00> : vector<16xf32>
    %31 = vector.multi_reduction <add>, %30, %cst_13 [1] : vector<16x16xf32> to vector<16xf32>
    %32 = vector.shape_cast %31 : vector<16xf32> to vector<16x1xf32>
    %33 = tpu.reciprocal %32 {approx = true} : vector<16x1xf32> -> vector<16x1xf32>
    %34 = vector.broadcast %33 : vector<16x1xf32> to vector<16x16xf32>
    %35 = arith.mulf %30, %34 : vector<16x16xf32>
    %36 = arith.truncf %35 : vector<16x16xf32> to vector<16x16xbf16>
    %cst_14 = arith.constant dense<0.000000e+00> : vector<16x128xf32>
    %37 = tpu.matmul %36, %20, %cst_14 {dimension_numbers = #tpu.dot_dimension_numbers<[1], [0], [0], [1], [0, 0, 1, 1], [], []>} : vector<16x16xbf16>, vector<16x128xbf16>, vector<16x128xf32> -> vector<16x128xf32>
    %38 = arith.truncf %37 : vector<16x128xf32> to vector<16x128xbf16>
    %39 = vector.extract_strided_slice %9 {offsets = [0, 128], sizes = [16, 128], strides = [1, 1]} : vector<16x256xbf16> to vector<16x128xbf16>
    %40 = vector.extract_strided_slice %11 {offsets = [0, 128], sizes = [16, 128], strides = [1, 1]} : vector<16x256xbf16> to vector<16x128xbf16>
    %41 = vector.extract_strided_slice %13 {offsets = [0, 128], sizes = [16, 128], strides = [1, 1]} : vector<16x256xbf16> to vector<16x128xbf16>
    %cst_15 = arith.constant dense<0.000000e+00> : vector<16x16xf32>
    %42 = tpu.matmul %39, %40, %cst_15 {dimension_numbers = #tpu.dot_dimension_numbers<[1], [1], [0], [0], [0, 0, 1, 0], [], []>} : vector<16x128xbf16>, vector<16x128xbf16>, vector<16x16xf32> -> vector<16x16xf32>
    %cst_16 = arith.constant 0.0883883461 : f32
    %43 = vector.broadcast %cst_16 : f32 to vector<16x16xf32>
    %44 = arith.mulf %42, %43 : vector<16x16xf32>
    %cst_17 = arith.constant -1.000000e+09 : f32
    %45 = vector.broadcast %cst_17 : f32 to vector<16x16xf32>
    %46 = arith.select %17, %45, %44 : vector<16x16xi1>, vector<16x16xf32>
    %cst_18 = arith.constant dense<0xFF800000> : vector<16xf32>
    %47 = vector.multi_reduction <maximumf>, %46, %cst_18 [1] : vector<16x16xf32> to vector<16xf32>
    %48 = vector.shape_cast %47 : vector<16xf32> to vector<16x1xf32>
    %49 = vector.broadcast %48 : vector<16x1xf32> to vector<16x16xf32>
    %50 = arith.subf %46, %49 : vector<16x16xf32>
    %51 = math.exp %50 : vector<16x16xf32>
    %cst_19 = arith.constant dense<0.000000e+00> : vector<16xf32>
    %52 = vector.multi_reduction <add>, %51, %cst_19 [1] : vector<16x16xf32> to vector<16xf32>
    %53 = vector.shape_cast %52 : vector<16xf32> to vector<16x1xf32>
    %54 = tpu.reciprocal %53 {approx = true} : vector<16x1xf32> -> vector<16x1xf32>
    %55 = vector.broadcast %54 : vector<16x1xf32> to vector<16x16xf32>
    %56 = arith.mulf %51, %55 : vector<16x16xf32>
    %57 = arith.truncf %56 : vector<16x16xf32> to vector<16x16xbf16>
    %cst_20 = arith.constant dense<0.000000e+00> : vector<16x128xf32>
    %58 = tpu.matmul %57, %41, %cst_20 {dimension_numbers = #tpu.dot_dimension_numbers<[1], [0], [0], [1], [0, 0, 1, 1], [], []>} : vector<16x16xbf16>, vector<16x128xbf16>, vector<16x128xf32> -> vector<16x128xf32>
    %59 = arith.truncf %58 : vector<16x128xf32> to vector<16x128xbf16>
    %60 = tpu.concatenate %38, %59 in 1 : vector<16x128xbf16>, vector<16x128xbf16> -> vector<16x256xbf16>
    %c0_21 = arith.constant 0 : index
    %c0_22 = arith.constant 0 : index
    %61 = vector.load %arg5[%c0_21, %c0_22] : memref<256x256xbf16, #tpu.memory_space<vmem>>, vector<256x256xbf16>
    %cst_23 = arith.constant dense<0.000000e+00> : vector<16x256xf32>
    %62 = tpu.matmul %60, %61, %cst_23 {dimension_numbers = #tpu.dot_dimension_numbers<[1], [0], [0], [1], [0, 0, 1, 1], [], []>} : vector<16x256xbf16>, vector<256x256xbf16>, vector<16x256xf32> -> vector<16x256xf32>
    %c0_24 = arith.constant 0 : index
    %c0_25 = arith.constant 0 : index
    %63 = vector.load %arg6[%c0_24, %c0_25] : memref<1x256xf32, #tpu.memory_space<vmem>>, vector<1x256xf32>
    %64 = vector.broadcast %63 : vector<1x256xf32> to vector<16x256xf32>
    %65 = arith.addf %62, %64 : vector<16x256xf32>
    %66 = arith.addf %65, %2 : vector<16x256xf32>
    %c0_26 = arith.constant 0 : index
    %c0_27 = arith.constant 0 : index
    %67 = vector.load %arg7[%c0_26, %c0_27] : memref<1x256xf32, #tpu.memory_space<vmem>>, vector<1x256xf32>
    %c0_28 = arith.constant 0 : index
    %c0_29 = arith.constant 0 : index
    %68 = vector.load %arg8[%c0_28, %c0_29] : memref<1x256xf32, #tpu.memory_space<vmem>>, vector<1x256xf32>
    %cst_30 = arith.constant dense<0.000000e+00> : vector<16xf32>
    %69 = vector.multi_reduction <add>, %66, %cst_30 [1] : vector<16x256xf32> to vector<16xf32>
    %70 = vector.shape_cast %69 : vector<16xf32> to vector<16x1xf32>
    %cst_31 = arith.constant 2.560000e+02 : f32
    %71 = vector.broadcast %cst_31 : f32 to vector<16x1xf32>
    %72 = arith.divf %70, %71 : vector<16x1xf32>
    %73 = vector.broadcast %72 : vector<16x1xf32> to vector<16x256xf32>
    %74 = arith.subf %66, %73 : vector<16x256xf32>
    %75 = arith.mulf %74, %74 : vector<16x256xf32>
    %cst_32 = arith.constant dense<0.000000e+00> : vector<16xf32>
    %76 = vector.multi_reduction <add>, %75, %cst_32 [1] : vector<16x256xf32> to vector<16xf32>
    %77 = vector.shape_cast %76 : vector<16xf32> to vector<16x1xf32>
    %cst_33 = arith.constant 2.560000e+02 : f32
    %78 = vector.broadcast %cst_33 : f32 to vector<16x1xf32>
    %79 = arith.divf %77, %78 : vector<16x1xf32>
    %cst_34 = arith.constant 9.99999974E-6 : f32
    %80 = vector.broadcast %cst_34 : f32 to vector<16x1xf32>
    %81 = arith.addf %79, %80 : vector<16x1xf32>
    %82 = math.rsqrt %81 : vector<16x1xf32>
    %83 = vector.broadcast %82 : vector<16x1xf32> to vector<16x256xf32>
    %84 = arith.mulf %74, %83 : vector<16x256xf32>
    %85 = vector.broadcast %67 : vector<1x256xf32> to vector<16x256xf32>
    %86 = arith.mulf %84, %85 : vector<16x256xf32>
    %87 = vector.broadcast %68 : vector<1x256xf32> to vector<16x256xf32>
    %88 = arith.addf %86, %87 : vector<16x256xf32>
    %89 = arith.truncf %88 : vector<16x256xf32> to vector<16x256xbf16>
    %c0_35 = arith.constant 0 : index
    %c0_36 = arith.constant 0 : index
    %90 = vector.load %arg9[%c0_35, %c0_36] : memref<256x512xbf16, #tpu.memory_space<vmem>>, vector<256x512xbf16>
    %cst_37 = arith.constant dense<0.000000e+00> : vector<16x512xf32>
    %91 = tpu.matmul %89, %90, %cst_37 {dimension_numbers = #tpu.dot_dimension_numbers<[1], [0], [0], [1], [0, 0, 1, 1], [], []>} : vector<16x256xbf16>, vector<256x512xbf16>, vector<16x512xf32> -> vector<16x512xf32>
    %cst_38 = arith.constant 0.000000e+00 : f32
    %92 = vector.broadcast %cst_38 : f32 to vector<16x512xf32>
    %93 = arith.maximumf %91, %92 : vector<16x512xf32>
    %94 = arith.truncf %93 : vector<16x512xf32> to vector<16x512xbf16>
    %c0_39 = arith.constant 0 : index
    %c0_40 = arith.constant 0 : index
    %95 = vector.load %arg10[%c0_39, %c0_40] : memref<512x256xbf16, #tpu.memory_space<vmem>>, vector<512x256xbf16>
    %cst_41 = arith.constant dense<0.000000e+00> : vector<16x256xf32>
    %96 = tpu.matmul %94, %95, %cst_41 {dimension_numbers = #tpu.dot_dimension_numbers<[1], [0], [0], [1], [0, 0, 1, 1], [], []>} : vector<16x512xbf16>, vector<512x256xbf16>, vector<16x256xf32> -> vector<16x256xf32>
    %97 = arith.addf %96, %88 : vector<16x256xf32>
    %c0_42 = arith.constant 0 : index
    %c0_43 = arith.constant 0 : index
    %98 = vector.load %arg11[%c0_42, %c0_43] : memref<1x256xf32, #tpu.memory_space<vmem>>, vector<1x256xf32>
    %c0_44 = arith.constant 0 : index
    %c0_45 = arith.constant 0 : index
    %99 = vector.load %arg12[%c0_44, %c0_45] : memref<1x256xf32, #tpu.memory_space<vmem>>, vector<1x256xf32>
    %cst_46 = arith.constant dense<0.000000e+00> : vector<16xf32>
    %100 = vector.multi_reduction <add>, %97, %cst_46 [1] : vector<16x256xf32> to vector<16xf32>
    %101 = vector.shape_cast %100 : vector<16xf32> to vector<16x1xf32>
    %cst_47 = arith.constant 2.560000e+02 : f32
    %102 = vector.broadcast %cst_47 : f32 to vector<16x1xf32>
    %103 = arith.divf %101, %102 : vector<16x1xf32>
    %104 = vector.broadcast %103 : vector<16x1xf32> to vector<16x256xf32>
    %105 = arith.subf %97, %104 : vector<16x256xf32>
    %106 = arith.mulf %105, %105 : vector<16x256xf32>
    %cst_48 = arith.constant dense<0.000000e+00> : vector<16xf32>
    %107 = vector.multi_reduction <add>, %106, %cst_48 [1] : vector<16x256xf32> to vector<16xf32>
    %108 = vector.shape_cast %107 : vector<16xf32> to vector<16x1xf32>
    %cst_49 = arith.constant 2.560000e+02 : f32
    %109 = vector.broadcast %cst_49 : f32 to vector<16x1xf32>
    %110 = arith.divf %108, %109 : vector<16x1xf32>
    %cst_50 = arith.constant 9.99999974E-6 : f32
    %111 = vector.broadcast %cst_50 : f32 to vector<16x1xf32>
    %112 = arith.addf %110, %111 : vector<16x1xf32>
    %113 = math.rsqrt %112 : vector<16x1xf32>
    %114 = vector.broadcast %113 : vector<16x1xf32> to vector<16x256xf32>
    %115 = arith.mulf %105, %114 : vector<16x256xf32>
    %116 = vector.broadcast %98 : vector<1x256xf32> to vector<16x256xf32>
    %117 = arith.mulf %115, %116 : vector<16x256xf32>
    %118 = vector.broadcast %99 : vector<1x256xf32> to vector<16x256xf32>
    %119 = arith.addf %117, %118 : vector<16x256xf32>
    %c0_51 = arith.constant 0 : index
    %c0_52 = arith.constant 0 : index
    %c0_53 = arith.constant 0 : index
    %120 = vector.load %arg13[%c0_51, %c0_52, %c0_53] : memref<1x16x256xf32, #tpu.memory_space<vmem>>, vector<1x16x256xf32>
    %121 = vector.shape_cast %120 : vector<1x16x256xf32> to vector<16x256xf32>
    %122 = vector.shape_cast %119 : vector<16x256xf32> to vector<1x16x256xf32>
    tpu.vector_store %arg13[%c0_51, %c0_52, %c0_53], %122 {strides = array<i32>} : memref<1x16x256xf32, #tpu.memory_space<vmem>>, vector<1x16x256xf32>,
    return
  }
  func.func @transform_0(%arg0: i32) -> (i32, i32, i32) {
    %c0_i32 = arith.constant 0 : i32
    %c0_i32_0 = arith.constant 0 : i32
    %c0_i32_1 = arith.constant 0 : i32
    return %arg0, %c0_i32, %c0_i32_0 : i32, i32, i32
  }
  func.func @transform_1(%arg0: i32) -> (i32, i32, i32) {
    %c0_i32 = arith.constant 0 : i32
    %c0_i32_0 = arith.constant 0 : i32
    %c0_i32_1 = arith.constant 0 : i32
    return %arg0, %c0_i32, %c0_i32_0 : i32, i32, i32
  }
  func.func @transform_2(%arg0: i32) -> (i32, i32) {
    %c0_i32 = arith.constant 0 : i32
    %c0_i32_0 = arith.constant 0 : i32
    %c0_i32_1 = arith.constant 0 : i32
    return %c0_i32, %c0_i32_0 : i32, i32
  }
  func.func @transform_3(%arg0: i32) -> (i32, i32) {
    %c0_i32 = arith.constant 0 : i32
    %c0_i32_0 = arith.constant 0 : i32
    %c0_i32_1 = arith.constant 0 : i32
    return %c0_i32, %c0_i32_0 : i32, i32
  }
  func.func @transform_4(%arg0: i32) -> (i32, i32) {
    %c0_i32 = arith.constant 0 : i32
    %c0_i32_0 = arith.constant 0 : i32
    %c0_i32_1 = arith.constant 0 : i32
    return %c0_i32, %c0_i32_0 : i32, i32
  }
  func.func @transform_5(%arg0: i32) -> (i32, i32) {
    %c0_i32 = arith.constant 0 : i32
    %c0_i32_0 = arith.constant 0 : i32
    %c0_i32_1 = arith.constant 0 : i32
    return %c0_i32, %c0_i32_0 : i32, i32
  }
  func.func @transform_6(%arg0: i32) -> (i32, i32) {
    %c0_i32 = arith.constant 0 : i32
    %c0_i32_0 = arith.constant 0 : i32
    %c0_i32_1 = arith.constant 0 : i32
    return %c0_i32, %c0_i32_0 : i32, i32
  }
  func.func @transform_7(%arg0: i32) -> (i32, i32) {
    %c0_i32 = arith.constant 0 : i32
    %c0_i32_0 = arith.constant 0 : i32
    %c0_i32_1 = arith.constant 0 : i32
    return %c0_i32, %c0_i32_0 : i32, i32
  }
  func.func @transform_8(%arg0: i32) -> (i32, i32) {
    %c0_i32 = arith.constant 0 : i32
    %c0_i32_0 = arith.constant 0 : i32
    %c0_i32_1 = arith.constant 0 : i32
    return %c0_i32, %c0_i32_0 : i32, i32
  }
  func.func @transform_9(%arg0: i32) -> (i32, i32) {
    %c0_i32 = arith.constant 0 : i32
    %c0_i32_0 = arith.constant 0 : i32
    %c0_i32_1 = arith.constant 0 : i32
    return %c0_i32, %c0_i32_0 : i32, i32
  }
  func.func @transform_10(%arg0: i32) -> (i32, i32) {
    %c0_i32 = arith.constant 0 : i32
    %c0_i32_0 = arith.constant 0 : i32
    %c0_i32_1 = arith.constant 0 : i32
    return %c0_i32, %c0_i32_0 : i32, i32
  }
  func.func @transform_11(%arg0: i32) -> (i32, i32) {
    %c0_i32 = arith.constant 0 : i32
    %c0_i32_0 = arith.constant 0 : i32
    %c0_i32_1 = arith.constant 0 : i32
    return %c0_i32, %c0_i32_0 : i32, i32
  }
  func.func @transform_12(%arg0: i32) -> (i32, i32, i32) {
    %c0_i32 = arith.constant 0 : i32
    %c0_i32_0 = arith.constant 0 : i32
    %c0_i32_1 = arith.constant 0 : i32
    return %arg0, %c0_i32, %c0_i32_0 : i32, i32, i32
  }
}

</mosaic_0001>

<llo_original>
// kernel: tpu_custom_call.1
$region0: #{tpu_custom_call.1}
  #allocation0 [shape = 'u32[]', space=smem, size = 0x4, offset = 0x4, fixed_abs, tag = 'smem constant byte address 0x4 - core index']
  #allocation1 [shape = 'u32[144,128]{1,0:T(1,128)}', space=vmem, size = 0x12000, scoped, tag = 'internal scratch']
  %s0 = inlined_call_operand.hbm [shape: bf16[2,16,256], index: 0, kind: input, shape index: {}]
  %s1 = inlined_call_operand.hbm [shape: s8[2,16,16], index: 1, kind: input, shape index: {}]
  %s2 = inlined_call_operand.hbm [shape: bf16[256,768], index: 2, kind: input, shape index: {}]
  %s3 = inlined_call_operand.vmem [shape: f32[1,768], index: 3, kind: input, shape index: {}]
  %s4 = inlined_call_operand.hbm [shape: bf16[256,256], index: 4, kind: input, shape index: {}]
  %s5 = inlined_call_operand.vmem [shape: f32[1,256], index: 5, kind: input, shape index: {}]
  %s6 = inlined_call_operand.vmem [shape: f32[1,256], index: 6, kind: input, shape index: {}]
  %s7 = inlined_call_operand.vmem [shape: f32[1,256], index: 7, kind: input, shape index: {}]
  %s8 = inlined_call_operand.hbm [shape: bf16[256,512], index: 8, kind: input, shape index: {}]
  %s9 = inlined_call_operand.hbm [shape: bf16[512,256], index: 9, kind: input, shape index: {}]
  %s10 = inlined_call_operand.vmem [shape: f32[1,256], index: 10, kind: input, shape index: {}]
  %s11 = inlined_call_operand.vmem [shape: f32[1,256], index: 11, kind: input, shape index: {}]
  %s12 = inlined_call_operand.hbm [shape: f32[2,16,256], index: 12, kind: output, shape index: {}]
  %s13 = sld [smem:[#allocation0]]
  $region105: #{tpu_custom_call.1} parent=0
    _
  %s15 = ssub.s32 1, %s13
  %s16 = scalar_select 0, %s15, %s13
  $region1: #{tpu_custom_call.1} parent=0
    #allocation2 [shape = 'u8[16384]{0}', space=vmem, size = 0x4000, scoped, tag = 'input window, operand 0']
    #allocation3 [shape = 's32[2]{0}', space=sflag, size = 0x8, scoped, tag = 'scoped memory for tpu_custom_call.1']
    #allocation4 [shape = 's32[2]{0}', space=sflag, size = 0x8, scoped, tag = 'scoped memory for tpu_custom_call.1']
    #allocation5 [shape = 'u8[4096]{0}', space=vmem, size = 0x1000, scoped, tag = 'input window, operand 1']
    #allocation6 [shape = 's32[2]{0}', space=sflag, size = 0x8, scoped, tag = 'scoped memory for tpu_custom_call.1']
    #allocation7 [shape = 'u8[393216]{0}', space=vmem, size = 0x60000, scoped, tag = 'input window, operand 2, single buffered']
    #allocation8 [shape = 'u8[131072]{0}', space=vmem, size = 0x20000, scoped, tag = 'input window, operand 4, single buffered']
    #allocation9 [shape = 's32[1]{0}', space=sflag, size = 0x4, scoped, tag = 'scoped memory for tpu_custom_call.1']
    #allocation10 [shape = 'u8[262144]{0}', space=vmem, size = 0x40000, scoped, tag = 'input window, operand 8, single buffered']
    #allocation11 [shape = 'u8[262144]{0}', space=vmem, size = 0x40000, scoped, tag = 'input window, operand 9, single buffered']
    #allocation12 [shape = 's32[1]{0}', space=sflag, size = 0x4, scoped, tag = 'scoped memory for tpu_custom_call.1']
    #allocation13 [shape = 'u8[32768]{0}', space=vmem, size = 0x8000, scoped, tag = 'output window, operand 0']
    %17 = vsyncpa [#allocation3], 0
    %s18 = scalar_lea.sflag [#allocation3], 1
    %19 = vsyncpa %s18, 0
    %20 = vsyncpa [#allocation6], 0
    %s21 = scalar_lea.sflag [#allocation6], 1
    %22 = vsyncpa %s21, 0
    %23 = vsyncpa [#allocation9], 0
    %24 = vsyncpa [#allocation12], 0
    %25 = vsyncpa [#allocation4], 0
    %s26 = scalar_lea.sflag [#allocation4], 1
    %27 = vsyncpa %s26, 0
    loop: start=0, step=1, limit=4
    $region2: #{tpu_custom_call.1} parent=1 // loop_pre_header
      _
    $region3: #{tpu_custom_call.1} parent=1 // loop_header
      %s29 = sphi 0, %s33
      %p30 = scmp.ge.s32.totalorder %s29, 4
      %s39 = sphi 0, %s41
      %s42 = sphi 0, %s39
      %s43 = sphi 0, %s42
      %s59 = sphi 0, %s43
      %s65 = sphi 0, %s67
      %s68 = sphi 0, %s65
      %s69 = sphi 0, %s68
      %s85 = sphi 0, %s69
      %s89 = sphi 0, %s89
      %s91 = sphi 0, %s89
      %s92 = sphi 0, %s91
      %s106 = sphi 0, %s92
      %s110 = sphi 0, %s110
      %s112 = sphi 0, %s110
      %s113 = sphi 0, %s112
      %s127 = sphi 0, %s113
      %s131 = sphi 0, %s131
      %s133 = sphi 0, %s131
      %s134 = sphi 0, %s133
      %s148 = sphi 0, %s134
      %s152 = sphi 0, %s152
      %s154 = sphi 0, %s152
      %s155 = sphi 0, %s154
      %s169 = sphi 0, %s155
      %s173 = sphi 0, %s173
      %s175 = sphi 0, %s173
      %s176 = sphi 0, %s175
      %s190 = sphi 0, %s176
      %s194 = sphi 0, %s194
      %s196 = sphi 0, %s194
      %s197 = sphi 0, %s196
      %s211 = sphi 0, %s197
      %s215 = sphi 0, %s215
      %s217 = sphi 0, %s215
      %s218 = sphi 0, %s217
      %s232 = sphi 0, %s218
      %s236 = sphi 0, %s236
      %s238 = sphi 0, %s236
      %s239 = sphi 0, %s238
      %s253 = sphi 0, %s239
      %s257 = sphi 0, %s257
      %s259 = sphi 0, %s257
      %s260 = sphi 0, %s259
      %s274 = sphi 0, %s260
      %s278 = sphi 0, %s278
      %s280 = sphi 0, %s278
      %s281 = sphi 0, %s280
      %s295 = sphi 0, %s281
      %s301 = sphi 0, %s303
      %s304 = sphi 0, %s301
      %s305 = sphi 0, %s304
      %s321 = sphi 0, %s305
    $region4: #{tpu_custom_call.1} parent=1 // loop_header_branch
      %32 = sbr.rel (%p30) target = $region8
    $region5: #{tpu_custom_call.1} parent=1 // loop_body
      %s34 = ssub.s32 %s29, 1
      %s35 = ssub.s32 %s29, 2
      %s36 = sadd.s32 %s29, 1
      %s37 = ssub.s32 %s29, %s36
      %p38 = scmp.eq.s32.totalorder %s37, 0
      %s40 = sadd.s32 %s39, 1
      %s41 = scalar_select %p38, %s39, %s40
      %p44 = pneg %p38
      %p45 = scmp.eq.s32.totalorder %s29, 1
      %p46 = por %p44, %p45
      %p47 = scmp.ne.s32.totalorder %s39, %s42
      %p48 = scmp.eq.s32.totalorder %s29, 0
      %p49 = por %p47, %p48
      %p50 = scmp.ne.s32.totalorder %s39, %s42
      %p51 = scmp.eq.s32.totalorder %s34, 1
      %p52 = por %p50, %p51
      %p53 = scmp.ne.s32.totalorder %s42, %s43
      %p54 = scmp.eq.s32.totalorder %s34, 0
      %p55 = por %p53, %p54
      %p56 = scmp.ne.s32.totalorder %s42, %s43
      %p57 = scmp.eq.s32.totalorder %s35, 1
      %p58 = por %p56, %p57
      %p60 = scmp.ne.s32.totalorder %s43, %s59
      %p61 = scmp.eq.s32.totalorder %s35, 0
      %p62 = por %p60, %p61
      %s63 = ssub.s32 %s29, %s36
      %p64 = scmp.eq.s32.totalorder %s63, 0
      %s66 = sadd.s32 %s65, 1
      %s67 = scalar_select %p64, %s65, %s66
      %p70 = pneg %p64
      %p71 = scmp.eq.s32.totalorder %s29, 1
      %p72 = por %p70, %p71
      %p73 = scmp.ne.s32.totalorder %s65, %s68
      %p74 = scmp.eq.s32.totalorder %s29, 0
      %p75 = por %p73, %p74
      %p76 = scmp.ne.s32.totalorder %s65, %s68
      %p77 = scmp.eq.s32.totalorder %s34, 1
      %p78 = por %p76, %p77
      %p79 = scmp.ne.s32.totalorder %s68, %s69
      %p80 = scmp.eq.s32.totalorder %s34, 0
      %p81 = por %p79, %p80
      %p82 = scmp.ne.s32.totalorder %s68, %s69
      %p83 = scmp.eq.s32.totalorder %s35, 1
      %p84 = por %p82, %p83
      %p86 = scmp.ne.s32.totalorder %s69, %s85
      %p87 = scmp.eq.s32.totalorder %s35, 0
      %p88 = por %p86, %p87
      %s90 = sadd.s32 %s89, 1
      %p93 = scmp.eq.s32.totalorder %s29, 1
      %p94 = scmp.ne.s32.totalorder %s89, %s91
      %p95 = scmp.eq.s32.totalorder %s29, 0
      %p96 = por %p94, %p95
      %p97 = scmp.ne.s32.totalorder %s89, %s91
      %p98 = scmp.eq.s32.totalorder %s34, 1
      %p99 = por %p97, %p98
      %p100 = scmp.ne.s32.totalorder %s91, %s92
      %p101 = scmp.eq.s32.totalorder %s34, 0
      %p102 = por %p100, %p101
      %p103 = scmp.ne.s32.totalorder %s91, %s92
      %p104 = scmp.eq.s32.totalorder %s35, 1
      %p105 = por %p103, %p104
      %p107 = scmp.ne.s32.totalorder %s92, %s106
      %p108 = scmp.eq.s32.totalorder %s35, 0
      %p109 = por %p107, %p108
      %s111 = sadd.s32 %s110, 1
      %p114 = scmp.eq.s32.totalorder %s29, 1
      %p115 = scmp.ne.s32.totalorder %s110, %s112
      %p116 = scmp.eq.s32.totalorder %s29, 0
      %p117 = por %p115, %p116
      %p118 = scmp.ne.s32.totalorder %s110, %s112
      %p119 = scmp.eq.s32.totalorder %s34, 1
      %p120 = por %p118, %p119
      %p121 = scmp.ne.s32.totalorder %s112, %s113
      %p122 = scmp.eq.s32.totalorder %s34, 0
      %p123 = por %p121, %p122
      %p124 = scmp.ne.s32.totalorder %s112, %s113
      %p125 = scmp.eq.s32.totalorder %s35, 1
      %p126 = por %p124, %p125
      %p128 = scmp.ne.s32.totalorder %s113, %s127
      %p129 = scmp.eq.s32.totalorder %s35, 0
      %p130 = por %p128, %p129
      %s132 = sadd.s32 %s131, 1
      %p135 = scmp.eq.s32.totalorder %s29, 1
      %p136 = scmp.ne.s32.totalorder %s131, %s133
      %p137 = scmp.eq.s32.totalorder %s29, 0
      %p138 = por %p136, %p137
      %p139 = scmp.ne.s32.totalorder %s131, %s133
      %p140 = scmp.eq.s32.totalorder %s34, 1
      %p141 = por %p139, %p140
      %p142 = scmp.ne.s32.totalorder %s133, %s134
      %p143 = scmp.eq.s32.totalorder %s34, 0
      %p144 = por %p142, %p143
      %p145 = scmp.ne.s32.totalorder %s133, %s134
      %p146 = scmp.eq.s32.totalorder %s35, 1
      %p147 = por %p145, %p146
      %p149 = scmp.ne.s32.totalorder %s134, %s148
      %p150 = scmp.eq.s32.totalorder %s35, 0
      %p151 = por %p149, %p150
      %s153 = sadd.s32 %s152, 1
      %p156 = scmp.eq.s32.totalorder %s29, 1
      %p157 = scmp.ne.s32.totalorder %s152, %s154
      %p158 = scmp.eq.s32.totalorder %s29, 0
      %p159 = por %p157, %p158
      %p160 = scmp.ne.s32.totalorder %s152, %s154
      %p161 = scmp.eq.s32.totalorder %s34, 1
      %p162 = por %p160, %p161
      %p163 = scmp.ne.s32.totalorder %s154, %s155
      %p164 = scmp.eq.s32.totalorder %s34, 0
      %p165 = por %p163, %p164
      %p166 = scmp.ne.s32.totalorder %s154, %s155
      %p167 = scmp.eq.s32.totalorder %s35, 1
      %p168 = por %p166, %p167
      %p170 = scmp.ne.s32.totalorder %s155, %s169
      %p171 = scmp.eq.s32.totalorder %s35, 0
      %p172 = por %p170, %p171
      %s174 = sadd.s32 %s173, 1
      %p177 = scmp.eq.s32.totalorder %s29, 1
      %p178 = scmp.ne.s32.totalorder %s173, %s175
      %p179 = scmp.eq.s32.totalorder %s29, 0
      %p180 = por %p178, %p179
      %p181 = scmp.ne.s32.totalorder %s173, %s175
      %p182 = scmp.eq.s32.totalorder %s34, 1
      %p183 = por %p181, %p182
      %p184 = scmp.ne.s32.totalorder %s175, %s176
      %p185 = scmp.eq.s32.totalorder %s34, 0
      %p186 = por %p184, %p185
      %p187 = scmp.ne.s32.totalorder %s175, %s176
      %p188 = scmp.eq.s32.totalorder %s35, 1
      %p189 = por %p187, %p188
      %p191 = scmp.ne.s32.totalorder %s176, %s190
      %p192 = scmp.eq.s32.totalorder %s35, 0
      %p193 = por %p191, %p192
      %s195 = sadd.s32 %s194, 1
      %p198 = scmp.eq.s32.totalorder %s29, 1
      %p199 = scmp.ne.s32.totalorder %s194, %s196
      %p200 = scmp.eq.s32.totalorder %s29, 0
      %p201 = por %p199, %p200
      %p202 = scmp.ne.s32.totalorder %s194, %s196
      %p203 = scmp.eq.s32.totalorder %s34, 1
      %p204 = por %p202, %p203
      %p205 = scmp.ne.s32.totalorder %s196, %s197
      %p206 = scmp.eq.s32.totalorder %s34, 0
      %p207 = por %p205, %p206
      %p208 = scmp.ne.s32.totalorder %s196, %s197
      %p209 = scmp.eq.s32.totalorder %s35, 1
      %p210 = por %p208, %p209
      %p212 = scmp.ne.s32.totalorder %s197, %s211
      %p213 = scmp.eq.s32.totalorder %s35, 0
      %p214 = por %p212, %p213
      %s216 = sadd.s32 %s215, 1
      %p219 = scmp.eq.s32.totalorder %s29, 1
      %p220 = scmp.ne.s32.totalorder %s215, %s217
      %p221 = scmp.eq.s32.totalorder %s29, 0
      %p222 = por %p220, %p221
      %p223 = scmp.ne.s32.totalorder %s215, %s217
      %p224 = scmp.eq.s32.totalorder %s34, 1
      %p225 = por %p223, %p224
      %p226 = scmp.ne.s32.totalorder %s217, %s218
      %p227 = scmp.eq.s32.totalorder %s34, 0
      %p228 = por %p226, %p227
      %p229 = scmp.ne.s32.totalorder %s217, %s218
      %p230 = scmp.eq.s32.totalorder %s35, 1
      %p231 = por %p229, %p230
      %p233 = scmp.ne.s32.totalorder %s218, %s232
      %p234 = scmp.eq.s32.totalorder %s35, 0
      %p235 = por %p233, %p234
      %s237 = sadd.s32 %s236, 1
      %p240 = scmp.eq.s32.totalorder %s29, 1
      %p241 = scmp.ne.s32.totalorder %s236, %s238
      %p242 = scmp.eq.s32.totalorder %s29, 0
      %p243 = por %p241, %p242
      %p244 = scmp.ne.s32.totalorder %s236, %s238
      %p245 = scmp.eq.s32.totalorder %s34, 1
      %p246 = por %p244, %p245
      %p247 = scmp.ne.s32.totalorder %s238, %s239
      %p248 = scmp.eq.s32.totalorder %s34, 0
      %p249 = por %p247, %p248
      %p250 = scmp.ne.s32.totalorder %s238, %s239
      %p251 = scmp.eq.s32.totalorder %s35, 1
      %p252 = por %p250, %p251
      %p254 = scmp.ne.s32.totalorder %s239, %s253
      %p255 = scmp.eq.s32.totalorder %s35, 0
      %p256 = por %p254, %p255
      %s258 = sadd.s32 %s257, 1
      %p261 = scmp.eq.s32.totalorder %s29, 1
      %p262 = scmp.ne.s32.totalorder %s257, %s259
      %p263 = scmp.eq.s32.totalorder %s29, 0
      %p264 = por %p262, %p263
      %p265 = scmp.ne.s32.totalorder %s257, %s259
      %p266 = scmp.eq.s32.totalorder %s34, 1
      %p267 = por %p265, %p266
      %p268 = scmp.ne.s32.totalorder %s259, %s260
      %p269 = scmp.eq.s32.totalorder %s34, 0
      %p270 = por %p268, %p269
      %p271 = scmp.ne.s32.totalorder %s259, %s260
      %p272 = scmp.eq.s32.totalorder %s35, 1
      %p273 = por %p271, %p272
      %p275 = scmp.ne.s32.totalorder %s260, %s274
      %p276 = scmp.eq.s32.totalorder %s35, 0
      %p277 = por %p275, %p276
      %s279 = sadd.s32 %s278, 1
      %p282 = scmp.eq.s32.totalorder %s29, 1
      %p283 = scmp.ne.s32.totalorder %s278, %s280
      %p284 = scmp.eq.s32.totalorder %s29, 0
      %p285 = por %p283, %p284
      %p286 = scmp.ne.s32.totalorder %s278, %s280
      %p287 = scmp.eq.s32.totalorder %s34, 1
      %p288 = por %p286, %p287
      %p289 = scmp.ne.s32.totalorder %s280, %s281
      %p290 = scmp.eq.s32.totalorder %s34, 0
      %p291 = por %p289, %p290
      %p292 = scmp.ne.s32.totalorder %s280, %s281
      %p293 = scmp.eq.s32.totalorder %s35, 1
      %p294 = por %p292, %p293
      %p296 = scmp.ne.s32.totalorder %s281, %s295
      %p297 = scmp.eq.s32.totalorder %s35, 0
      %p298 = por %p296, %p297
      %s299 = ssub.s32 %s29, %s36
      %p300 = scmp.eq.s32.totalorder %s299, 0
      %s302 = sadd.s32 %s301, 1
      %s303 = scalar_select %p300, %s301, %s302
      %p306 = pneg %p300
      %p307 = scmp.eq.s32.totalorder %s29, 1
      %p308 = por %p306, %p307
      %p309 = scmp.ne.s32.totalorder %s301, %s304
      %p310 = scmp.eq.s32.totalorder %s29, 0
      %p311 = por %p309, %p310
      %p312 = scmp.ne.s32.totalorder %s301, %s304
      %p313 = scmp.eq.s32.totalorder %s34, 1
      %p314 = por %p312, %p313
      %p315 = scmp.ne.s32.totalorder %s304, %s305
      %p316 = scmp.eq.s32.totalorder %s34, 0
      %p317 = por %p315, %p316
      %p318 = scmp.ne.s32.totalorder %s304, %s305
      %p319 = scmp.eq.s32.totalorder %s35, 1
      %p320 = por %p318, %p319
      %p322 = scmp.ne.s32.totalorder %s305, %s321
      %p323 = scmp.eq.s32.totalorder %s35, 0
      %p324 = por %p322, %p323
      %p325 = scmp.le.s32.totalorder 1, %s29
      %p326 = scmp.lt.s32.totalorder %s29, 3
      %p327 = pnand %p325, %p326
      %p328 = pneg %p327
      // Predicated region
      $region9: #{tpu_custom_call.1} parent=5 // pred_check
        _
      $region10: #{tpu_custom_call.1} parent=5 // pred_check_branch
        %330 = sbr.rel (%p327) target = $region12
      $region11: #{tpu_custom_call.1} parent=5 // pred_region
        %s331 = ssub.s32 %s29, 1
        // Predicated region
        $region13: #{tpu_custom_call.1} parent=11 // pred_check
          %p332 = pneg %p102
        $region14: #{tpu_custom_call.1} parent=11 // pred_check_branch
          %334 = sbr.rel (%p332) target = $region16
        $region15: #{tpu_custom_call.1} parent=11 // pred_region
          %s336 = ssub.s32 12288, 12288
          %337 = vsyncadd [#allocation6], %s336
          %s338 = sshll.u32 [#allocation7], 4
          %s339 = int_to_ptr.vmem [resolvable:$true] %s338
          %344 = dma.hbm_to_vmem [thread:$0]  %s2, 12288, %s339, [#allocation6], 384, 384, 24
        $region16: #{tpu_custom_call.1} parent=11 // pred_fallthru
          _
        // Predicated region
        $region17: #{tpu_custom_call.1} parent=11 // pred_check
          %p345 = pneg %p123
        $region18: #{tpu_custom_call.1} parent=11 // pred_check_branch
          %347 = sbr.rel (%p345) target = $region20
        $region19: #{tpu_custom_call.1} parent=11 // pred_region
          _
        $region20: #{tpu_custom_call.1} parent=11 // pred_fallthru
          _
        // Predicated region
        $region21: #{tpu_custom_call.1} parent=11 // pred_check
          %p348 = pneg %p144
        $region22: #{tpu_custom_call.1} parent=11 // pred_check_branch
          %350 = sbr.rel (%p348) target = $region24
        $region23: #{tpu_custom_call.1} parent=11 // pred_region
          %s352 = ssub.s32 4096, 4096
          %353 = vsyncadd [#allocation9], %s352
          %s354 = sshll.u32 [#allocation8], 4
          %s355 = int_to_ptr.vmem [resolvable:$true] %s354
          %360 = dma.hbm_to_vmem [thread:$0]  %s4, 4096, %s355, [#allocation9], 128, 128, 8
        $region24: #{tpu_custom_call.1} parent=11 // pred_fallthru
          _
        // Predicated region
        $region25: #{tpu_custom_call.1} parent=11 // pred_check
          %p361 = pneg %p165
        $region26: #{tpu_custom_call.1} parent=11 // pred_check_branch
          %363 = sbr.rel (%p361) target = $region28
        $region27: #{tpu_custom_call.1} parent=11 // pred_region
          _
        $region28: #{tpu_custom_call.1} parent=11 // pred_fallthru
          _
        // Predicated region
        $region29: #{tpu_custom_call.1} parent=11 // pred_check
          %p364 = pneg %p186
        $region30: #{tpu_custom_call.1} parent=11 // pred_check_branch
          %366 = sbr.rel (%p364) target = $region32
        $region31: #{tpu_custom_call.1} parent=11 // pred_region
          _
        $region32: #{tpu_custom_call.1} parent=11 // pred_fallthru
          _
        // Predicated region
        $region33: #{tpu_custom_call.1} parent=11 // pred_check
          %p367 = pneg %p207
        $region34: #{tpu_custom_call.1} parent=11 // pred_check_branch
          %369 = sbr.rel (%p367) target = $region36
        $region35: #{tpu_custom_call.1} parent=11 // pred_region
          _
        $region36: #{tpu_custom_call.1} parent=11 // pred_fallthru
          _
        // Predicated region
        $region37: #{tpu_custom_call.1} parent=11 // pred_check
          %p370 = pneg %p228
        $region38: #{tpu_custom_call.1} parent=11 // pred_check_branch
          %372 = sbr.rel (%p370) target = $region40
        $region39: #{tpu_custom_call.1} parent=11 // pred_region
          %s374 = ssub.s32 8192, 8192
          %375 = vsyncadd [#allocation9], %s374
          %s376 = sshll.u32 [#allocation10], 4
          %s377 = int_to_ptr.vmem [resolvable:$true] %s376
          %382 = dma.hbm_to_vmem [thread:$0]  %s8, 8192, %s377, [#allocation9], 256, 256, 16
        $region40: #{tpu_custom_call.1} parent=11 // pred_fallthru
          _
        // Predicated region
        $region41: #{tpu_custom_call.1} parent=11 // pred_check
          %p383 = pneg %p249
        $region42: #{tpu_custom_call.1} parent=11 // pred_check_branch
          %385 = sbr.rel (%p383) target = $region44
        $region43: #{tpu_custom_call.1} parent=11 // pred_region
          %s387 = ssub.s32 8192, 8192
          %388 = vsyncadd [#allocation12], %s387
          %s389 = sshll.u32 [#allocation11], 4
          %s390 = int_to_ptr.vmem [resolvable:$true] %s389
          %395 = dma.hbm_to_vmem [thread:$0]  %s9, 8192, %s390, [#allocation12], 128, 128, 8
        $region44: #{tpu_custom_call.1} parent=11 // pred_fallthru
          _
        // Predicated region
        $region45: #{tpu_custom_call.1} parent=11 // pred_check
          %p396 = pneg %p270
        $region46: #{tpu_custom_call.1} parent=11 // pred_check_branch
          %398 = sbr.rel (%p396) target = $region48
        $region47: #{tpu_custom_call.1} parent=11 // pred_region
          _
        $region48: #{tpu_custom_call.1} parent=11 // pred_fallthru
          _
        // Predicated region
        $region49: #{tpu_custom_call.1} parent=11 // pred_check
          %p399 = pneg %p291
        $region50: #{tpu_custom_call.1} parent=11 // pred_check_branch
          %401 = sbr.rel (%p399) target = $region52
        $region51: #{tpu_custom_call.1} parent=11 // pred_region
          _
        $region52: #{tpu_custom_call.1} parent=11 // pred_fallthru
          _
      $region12: #{tpu_custom_call.1} parent=5 // pred_fallthru
        _
      %p402 = scmp.lt.s32.totalorder %s29, 2
      // Predicated region
      $region53: #{tpu_custom_call.1} parent=5 // pred_check
        %p403 = pneg %p402
      $region54: #{tpu_custom_call.1} parent=5 // pred_check_branch
        %405 = sbr.rel (%p403) target = $region56
      $region55: #{tpu_custom_call.1} parent=5 // pred_region
        // Predicated region
        $region57: #{tpu_custom_call.1} parent=55 // pred_check
          %p406 = pneg %p49
        $region58: #{tpu_custom_call.1} parent=55 // pred_check_branch
          %408 = sbr.rel (%p406) target = $region60
        $region59: #{tpu_custom_call.1} parent=55 // pred_region
          %s409 = sand.u32 %s39, 1
          %s410 = scalar_lea.sflag [#allocation3], %s409
          %s411 = sand.u32 %s39, 1
          %s412 = smul.addr %s411, 16
          %s413 = scalar_lea.vmem [#allocation2], %s412
          %s415 = ssub.s32 256, 256
          %416 = vsyncadd %s410, %s415
          %s417 = smul.addr %s29, 4
          %s418 = smul.addr %s417, 64
          %s419 = scalar_lea.hbm %s0, %s418
          %s420 = sshll.u32 %s413, 4
          %s421 = int_to_ptr.vmem [resolvable:$true] %s420
          %426 = dma.hbm_to_vmem [thread:$0]  %s419, 256, %s421, %s410, 128, 128, 8
        $region60: #{tpu_custom_call.1} parent=55 // pred_fallthru
          _
        // Predicated region
        $region61: #{tpu_custom_call.1} parent=55 // pred_check
          %p427 = pneg %p75
        $region62: #{tpu_custom_call.1} parent=55 // pred_check_branch
          %429 = sbr.rel (%p427) target = $region64
        $region63: #{tpu_custom_call.1} parent=55 // pred_region
          %s430 = sand.u32 %s29, 1
          %s431 = scalar_lea.sflag [#allocation6], %s430
          %s432 = sand.u32 %s65, 1
          %s433 = smul.addr %s432, 4
          %s434 = scalar_lea.vmem [#allocation5], %s433
          %s436 = ssub.s32 64, 64
          %437 = vsyncadd %s431, %s436
          %s438 = smul.addr %s29, 2
          %s439 = smul.addr %s438, 32
          %s440 = scalar_lea.hbm %s1, %s439
          %s441 = sshll.u32 %s434, 4
          %s442 = int_to_ptr.vmem [resolvable:$true] %s441
          %447 = dma.hbm_to_vmem [thread:$0]  %s440, 64, %s442, %s431, 32, 32, 2
        $region64: #{tpu_custom_call.1} parent=55 // pred_fallthru
          _
      $region56: #{tpu_custom_call.1} parent=5 // pred_fallthru
        _
      %p448 = scmp.le.s32.totalorder 1, %s29
      %p449 = scmp.lt.s32.totalorder %s29, 3
      %p450 = pnand %p448, %p449
      %p451 = pneg %p450
      // Predicated region
      $region65: #{tpu_custom_call.1} parent=5 // pred_check
        _
      $region66: #{tpu_custom_call.1} parent=5 // pred_check_branch
        %453 = sbr.rel (%p450) target = $region68
      $region67: #{tpu_custom_call.1} parent=5 // pred_region
        %s454 = ssub.s32 %s29, 1
        %s455 = sand.u32 %s42, 1
        %s456 = scalar_lea.sflag [#allocation3], %s455
        %s457 = sand.u32 %s42, 1
        %s458 = smul.addr %s457, 16
        %s459 = scalar_lea.vmem [#allocation2], %s458
        // Predicated region
        $region69: #{tpu_custom_call.1} parent=67 // pred_check
          %p460 = pneg %p55
        $region70: #{tpu_custom_call.1} parent=67 // pred_check_branch
          %462 = sbr.rel (%p460) target = $region72
        $region71: #{tpu_custom_call.1} parent=67 // pred_region
          %463 = dma.done %s456, 256
        $region72: #{tpu_custom_call.1} parent=67 // pred_fallthru
          _
        %s464 = sand.u32 %s34, 1
        %s465 = scalar_lea.sflag [#allocation6], %s464
        %s466 = sand.u32 %s68, 1
        %s467 = smul.addr %s466, 4
        %s468 = scalar_lea.vmem [#allocation5], %s467
        // Predicated region
        $region73: #{tpu_custom_call.1} parent=67 // pred_check
          %p469 = pneg %p81
        $region74: #{tpu_custom_call.1} parent=67 // pred_check_branch
          %471 = sbr.rel (%p469) target = $region76
        $region75: #{tpu_custom_call.1} parent=67 // pred_region
          %472 = dma.done %s465, 64
        $region76: #{tpu_custom_call.1} parent=67 // pred_fallthru
          _
        // Predicated region
        $region77: #{tpu_custom_call.1} parent=67 // pred_check
          %p473 = pneg %p102
        $region78: #{tpu_custom_call.1} parent=67 // pred_check_branch
          %475 = sbr.rel (%p473) target = $region80
        $region79: #{tpu_custom_call.1} parent=67 // pred_region
          %476 = dma.done [#allocation6], 12288
        $region80: #{tpu_custom_call.1} parent=67 // pred_fallthru
          _
        // Predicated region
        $region81: #{tpu_custom_call.1} parent=67 // pred_check
          %p477 = pneg %p144
        $region82: #{tpu_custom_call.1} parent=67 // pred_check_branch
          %479 = sbr.rel (%p477) target = $region84
        $region83: #{tpu_custom_call.1} parent=67 // pred_region
          %480 = dma.done [#allocation9], 4096
        $region84: #{tpu_custom_call.1} parent=67 // pred_fallthru
          _
        // Predicated region
        $region85: #{tpu_custom_call.1} parent=67 // pred_check
          %p481 = pneg %p228
        $region86: #{tpu_custom_call.1} parent=67 // pred_check_branch
          %483 = sbr.rel (%p481) target = $region88
        $region87: #{tpu_custom_call.1} parent=67 // pred_region
          %484 = dma.done [#allocation9], 8192
        $region88: #{tpu_custom_call.1} parent=67 // pred_fallthru
          _
        // Predicated region
        $region89: #{tpu_custom_call.1} parent=67 // pred_check
          %p485 = pneg %p249
        $region90: #{tpu_custom_call.1} parent=67 // pred_check_branch
          %487 = sbr.rel (%p485) target = $region92
        $region91: #{tpu_custom_call.1} parent=67 // pred_region
          %488 = dma.done [#allocation12], 8192
        $region92: #{tpu_custom_call.1} parent=67 // pred_fallthru
          _
        %s489 = sand.u32 %s42, 1
        %s490 = scalar_lea.sflag [#allocation3], %s489
        %s491 = sand.u32 %s42, 1
        %s492 = smul.addr %s491, 16
        %s493 = scalar_lea.vmem [#allocation2], %s492
        %p494 = pneg %p55
        %p495 = pneg %p52
        %s496 = sand.u32 %s34, 1
        %s497 = scalar_lea.sflag [#allocation6], %s496
        %s498 = sand.u32 %s68, 1
        %s499 = smul.addr %s498, 4
        %s500 = scalar_lea.vmem [#allocation5], %s499
        %p501 = pneg %p81
        %p502 = pneg %p78
        %p503 = pneg %p102
        %p504 = pneg %p99
        %p505 = pneg %p123
        %p506 = pneg %p120
        %p507 = pneg %p144
        %p508 = pneg %p141
        %p509 = pneg %p165
        %p510 = pneg %p162
        %p511 = pneg %p186
        %p512 = pneg %p183
        %p513 = pneg %p207
        %p514 = pneg %p204
        %p515 = pneg %p228
        %p516 = pneg %p225
        %p517 = pneg %p249
        %p518 = pneg %p246
        %p519 = pneg %p270
        %p520 = pneg %p267
        %p521 = pneg %p291
        %p522 = pneg %p288
        %p523 = pneg %p317
        %p524 = pneg %p314
        %s525 = sand.u32 %s304, 1
        %s526 = scalar_lea.sflag [#allocation4], %s525
        %s527 = sand.u32 %s304, 1
        %s528 = smul.addr %s527, 32
        %s529 = scalar_lea.vmem [#allocation13], %s528
        %v533 = vld [vmem:[%s459] sm:$0xff]
        %v534 = vld [vmem:[%s459 + $0x8] sm:$0xff]
        %v535 = vunpack.c.l.bf16 %v533
        %v536 = vunpack.c.h.bf16 %v533
        %v537 = vunpack.c.l.bf16 %v534
        %v538 = vunpack.c.h.bf16 %v534
        %v539 = vld [vmem:[#allocation7] sm:$0xff]
        %v540 = vld [vmem:[#allocation7 + $0x8] sm:$0xff]
        %v541 = vld [vmem:[#allocation7 + $0x10] sm:$0xff]
        %v542 = vld [vmem:[#allocation7 + $0x18] sm:$0xff]
        %v543 = vld [vmem:[#allocation7 + $0x20] sm:$0xff]
        %v544 = vld [vmem:[#allocation7 + $0x28] sm:$0xff]
        %v545 = vld [vmem:[#allocation7 + $0x30] sm:$0xff]
        %v546 = vld [vmem:[#allocation7 + $0x38] sm:$0xff]
        %v547 = vld [vmem:[#allocation7 + $0x40] sm:$0xff]
        %v548 = vld [vmem:[#allocation7 + $0x48] sm:$0xff]
        %v549 = vld [vmem:[#allocation7 + $0x50] sm:$0xff]
        %v550 = vld [vmem:[#allocation7 + $0x58] sm:$0xff]
        %v551 = vld [vmem:[#allocation7 + $0x60] sm:$0xff]
        %v552 = vld [vmem:[#allocation7 + $0x68] sm:$0xff]
        %v553 = vld [vmem:[#allocation7 + $0x70] sm:$0xff]
        %v554 = vld [vmem:[#allocation7 + $0x78] sm:$0xff]
        %v555 = vld [vmem:[#allocation7 + $0x80] sm:$0xff]
        %v556 = vld [vmem:[#allocation7 + $0x88] sm:$0xff]
        %v557 = vld [vmem:[#allocation7 + $0x90] sm:$0xff]
        %v558 = vld [vmem:[#allocation7 + $0x98] sm:$0xff]
        %v559 = vld [vmem:[#allocation7 + $0xa0] sm:$0xff]
        %v560 = vld [vmem:[#allocation7 + $0xa8] sm:$0xff]
        %v561 = vld [vmem:[#allocation7 + $0xb0] sm:$0xff]
        %v562 = vld [vmem:[#allocation7 + $0xb8] sm:$0xff]
        %v563 = vld [vmem:[#allocation7 + $0xc0] sm:$0xff]
        %v564 = vld [vmem:[#allocation7 + $0xc8] sm:$0xff]
        %v565 = vld [vmem:[#allocation7 + $0xd0] sm:$0xff]
        %v566 = vld [vmem:[#allocation7 + $0xd8] sm:$0xff]
        %v567 = vld [vmem:[#allocation7 + $0xe0] sm:$0xff]
        %v568 = vld [vmem:[#allocation7 + $0xe8] sm:$0xff]
        %v569 = vld [vmem:[#allocation7 + $0xf0] sm:$0xff]
        %v570 = vld [vmem:[#allocation7 + $0xf8] sm:$0xff]
        %v571 = vld [vmem:[#allocation7 + $0x100] sm:$0xff]
        %v572 = vld [vmem:[#allocation7 + $0x108] sm:$0xff]
        %v573 = vld [vmem:[#allocation7 + $0x110] sm:$0xff]
        %v574 = vld [vmem:[#allocation7 + $0x118] sm:$0xff]
        %v575 = vld [vmem:[#allocation7 + $0x120] sm:$0xff]
        %v576 = vld [vmem:[#allocation7 + $0x128] sm:$0xff]
        %v577 = vld [vmem:[#allocation7 + $0x130] sm:$0xff]
        %v578 = vld [vmem:[#allocation7 + $0x138] sm:$0xff]
        %v579 = vld [vmem:[#allocation7 + $0x140] sm:$0xff]
        %v580 = vld [vmem:[#allocation7 + $0x148] sm:$0xff]
        %v581 = vld [vmem:[#allocation7 + $0x150] sm:$0xff]
        %v582 = vld [vmem:[#allocation7 + $0x158] sm:$0xff]
        %v583 = vld [vmem:[#allocation7 + $0x160] sm:$0xff]
        %v584 = vld [vmem:[#allocation7 + $0x168] sm:$0xff]
        %v585 = vld [vmem:[#allocation7 + $0x170] sm:$0xff]
        %v586 = vld [vmem:[#allocation7 + $0x178] sm:$0xff]
        %v587 = vld [vmem:[#allocation7 + $0x180] sm:$0xff]
        %v588 = vld [vmem:[#allocation7 + $0x188] sm:$0xff]
        %v589 = vld [vmem:[#allocation7 + $0x190] sm:$0xff]
        %v590 = vld [vmem:[#allocation7 + $0x198] sm:$0xff]
        %v591 = vld [vmem:[#allocation7 + $0x1a0] sm:$0xff]
        %v592 = vld [vmem:[#allocation7 + $0x1a8] sm:$0xff]
        %v593 = vld [vmem:[#allocation7 + $0x1b0] sm:$0xff]
        %v594 = vld [vmem:[#allocation7 + $0x1b8] sm:$0xff]
        %v595 = vld [vmem:[#allocation7 + $0x1c0] sm:$0xff]
        %v596 = vld [vmem:[#allocation7 + $0x1c8] sm:$0xff]
        %v597 = vld [vmem:[#allocation7 + $0x1d0] sm:$0xff]
        %v598 = vld [vmem:[#allocation7 + $0x1d8] sm:$0xff]
        %v599 = vld [vmem:[#allocation7 + $0x1e0] sm:$0xff]
        %v600 = vld [vmem:[#allocation7 + $0x1e8] sm:$0xff]
        %v601 = vld [vmem:[#allocation7 + $0x1f0] sm:$0xff]
        %v602 = vld [vmem:[#allocation7 + $0x1f8] sm:$0xff]
        %v603 = vld [vmem:[#allocation7 + $0x200] sm:$0xff]
        %v604 = vld [vmem:[#allocation7 + $0x208] sm:$0xff]
        %v605 = vld [vmem:[#allocation7 + $0x210] sm:$0xff]
        %v606 = vld [vmem:[#allocation7 + $0x218] sm:$0xff]
        %v607 = vld [vmem:[#allocation7 + $0x220] sm:$0xff]
        %v608 = vld [vmem:[#allocation7 + $0x228] sm:$0xff]
        %v609 = vld [vmem:[#allocation7 + $0x230] sm:$0xff]
        %v610 = vld [vmem:[#allocation7 + $0x238] sm:$0xff]
        %v611 = vld [vmem:[#allocation7 + $0x240] sm:$0xff]
        %v612 = vld [vmem:[#allocation7 + $0x248] sm:$0xff]
        %v613 = vld [vmem:[#allocation7 + $0x250] sm:$0xff]
        %v614 = vld [vmem:[#allocation7 + $0x258] sm:$0xff]
        %v615 = vld [vmem:[#allocation7 + $0x260] sm:$0xff]
        %v616 = vld [vmem:[#allocation7 + $0x268] sm:$0xff]
        %v617 = vld [vmem:[#allocation7 + $0x270] sm:$0xff]
        %v618 = vld [vmem:[#allocation7 + $0x278] sm:$0xff]
        %v619 = vld [vmem:[#allocation7 + $0x280] sm:$0xff]
        %v620 = vld [vmem:[#allocation7 + $0x288] sm:$0xff]
        %v621 = vld [vmem:[#allocation7 + $0x290] sm:$0xff]
        %v622 = vld [vmem:[#allocation7 + $0x298] sm:$0xff]
        %v623 = vld [vmem:[#allocation7 + $0x2a0] sm:$0xff]
        %v624 = vld [vmem:[#allocation7 + $0x2a8] sm:$0xff]
        %v625 = vld [vmem:[#allocation7 + $0x2b0] sm:$0xff]
        %v626 = vld [vmem:[#allocation7 + $0x2b8] sm:$0xff]
        %v627 = vld [vmem:[#allocation7 + $0x2c0] sm:$0xff]
        %v628 = vld [vmem:[#allocation7 + $0x2c8] sm:$0xff]
        %v629 = vld [vmem:[#allocation7 + $0x2d0] sm:$0xff]
        %v630 = vld [vmem:[#allocation7 + $0x2d8] sm:$0xff]
        %v631 = vld [vmem:[#allocation7 + $0x2e0] sm:$0xff]
        %v632 = vld [vmem:[#allocation7 + $0x2e8] sm:$0xff]
        %v633 = vld [vmem:[#allocation7 + $0x2f0] sm:$0xff]
        %v634 = vld [vmem:[#allocation7 + $0x2f8] sm:$0xff]
        %v635 = vld [vmem:[%s3] sm:$0x3f]
        %v637 = vlaneseq
        %v638 = vshrl.u32 %v637, 7
        %v639 = vsub.s32 0, %v638
        %v640 = vrot.slane %v635, %v639
        %v641 = vlaneseq
        %v642 = vshrl.u32 %v641, 7
        %v643 = vsub.s32 1, %v642
        %v644 = vrot.slane %v635, %v643
        %v645 = vlaneseq
        %v646 = vshrl.u32 %v645, 7
        %v647 = vsub.s32 2, %v646
        %v648 = vrot.slane %v635, %v647
        %v649 = vlaneseq
        %v650 = vshrl.u32 %v649, 7
        %v651 = vsub.s32 3, %v650
        %v652 = vrot.slane %v635, %v651
        %v653 = vlaneseq
        %v654 = vshrl.u32 %v653, 7
        %v655 = vsub.s32 4, %v654
        %v656 = vrot.slane %v635, %v655
        %v657 = vlaneseq
        %v658 = vshrl.u32 %v657, 7
        %v659 = vsub.s32 5, %v658
        %v660 = vrot.slane %v635, %v659
        %v669 = vunpack.c.l.b16 %v533
        %v670 = vunpack.c.h.b16 %v533
        %v671 = vunpack.c.l.b16 %v534
        %v672 = vunpack.c.h.b16 %v534
        %v673 = vpack.c.b16 %v671, %v669
        %v674 = vpack.c.b16 %v672, %v670
        %v773 = vunpack.c.l.b16 %v539
        %v774 = vunpack.c.h.b16 %v539
        %v775 = vunpack.c.l.b16 %v540
        %v776 = vunpack.c.h.b16 %v540
        %v777 = vunpack.c.l.b16 %v541
        %v778 = vunpack.c.h.b16 %v541
        %v779 = vunpack.c.l.b16 %v542
        %v780 = vunpack.c.h.b16 %v542
        %v781 = vunpack.c.l.b16 %v543
        %v782 = vunpack.c.h.b16 %v543
        %v783 = vunpack.c.l.b16 %v544
        %v784 = vunpack.c.h.b16 %v544
        %v785 = vunpack.c.l.b16 %v545
        %v786 = vunpack.c.h.b16 %v545
        %v787 = vunpack.c.l.b16 %v546
        %v788 = vunpack.c.h.b16 %v546
        %v789 = vunpack.c.l.b16 %v547
        %v790 = vunpack.c.h.b16 %v547
        %v791 = vunpack.c.l.b16 %v548
        %v792 = vunpack.c.h.b16 %v548
        %v793 = vunpack.c.l.b16 %v549
        %v794 = vunpack.c.h.b16 %v549
        %v795 = vunpack.c.l.b16 %v550
        %v796 = vunpack.c.h.b16 %v550
        %v797 = vunpack.c.l.b16 %v551
        %v798 = vunpack.c.h.b16 %v551
        %v799 = vunpack.c.l.b16 %v552
        %v800 = vunpack.c.h.b16 %v552
        %v801 = vunpack.c.l.b16 %v553
        %v802 = vunpack.c.h.b16 %v553
        %v803 = vunpack.c.l.b16 %v554
        %v804 = vunpack.c.h.b16 %v554
        %v805 = vunpack.c.l.b16 %v555
        %v806 = vunpack.c.h.b16 %v555
        %v807 = vunpack.c.l.b16 %v556
        %v808 = vunpack.c.h.b16 %v556
        %v809 = vunpack.c.l.b16 %v557
        %v810 = vunpack.c.h.b16 %v557
        %v811 = vunpack.c.l.b16 %v558
        %v812 = vunpack.c.h.b16 %v558
        %v813 = vunpack.c.l.b16 %v559
        %v814 = vunpack.c.h.b16 %v559
        %v815 = vunpack.c.l.b16 %v560
        %v816 = vunpack.c.h.b16 %v560
        %v817 = vunpack.c.l.b16 %v561
        %v818 = vunpack.c.h.b16 %v561
        %v819 = vunpack.c.l.b16 %v562
        %v820 = vunpack.c.h.b16 %v562
        %v821 = vunpack.c.l.b16 %v563
        %v822 = vunpack.c.h.b16 %v563
        %v823 = vunpack.c.l.b16 %v564
        %v824 = vunpack.c.h.b16 %v564
        %v825 = vunpack.c.l.b16 %v565
        %v826 = vunpack.c.h.b16 %v565
        %v827 = vunpack.c.l.b16 %v566
        %v828 = vunpack.c.h.b16 %v566
        %v829 = vunpack.c.l.b16 %v567
        %v830 = vunpack.c.h.b16 %v567
        %v831 = vunpack.c.l.b16 %v568
        %v832 = vunpack.c.h.b16 %v568
        %v833 = vunpack.c.l.b16 %v569
        %v834 = vunpack.c.h.b16 %v569
        %v835 = vunpack.c.l.b16 %v570
        %v836 = vunpack.c.h.b16 %v570
        %v837 = vunpack.c.l.b16 %v571
        %v838 = vunpack.c.h.b16 %v571
        %v839 = vunpack.c.l.b16 %v572
        %v840 = vunpack.c.h.b16 %v572
        %v841 = vunpack.c.l.b16 %v573
        %v842 = vunpack.c.h.b16 %v573
        %v843 = vunpack.c.l.b16 %v574
        %v844 = vunpack.c.h.b16 %v574
        %v845 = vunpack.c.l.b16 %v575
        %v846 = vunpack.c.h.b16 %v575
        %v847 = vunpack.c.l.b16 %v576
        %v848 = vunpack.c.h.b16 %v576
        %v849 = vunpack.c.l.b16 %v577
        %v850 = vunpack.c.h.b16 %v577
        %v851 = vunpack.c.l.b16 %v578
        %v852 = vunpack.c.h.b16 %v578
        %v853 = vunpack.c.l.b16 %v579
        %v854 = vunpack.c.h.b16 %v579
        %v855 = vunpack.c.l.b16 %v580
        %v856 = vunpack.c.h.b16 %v580
        %v857 = vunpack.c.l.b16 %v581
        %v858 = vunpack.c.h.b16 %v581
        %v859 = vunpack.c.l.b16 %v582
        %v860 = vunpack.c.h.b16 %v582
        %v861 = vunpack.c.l.b16 %v583
        %v862 = vunpack.c.h.b16 %v583
        %v863 = vunpack.c.l.b16 %v584
        %v864 = vunpack.c.h.b16 %v584
        %v865 = vunpack.c.l.b16 %v585
        %v866 = vunpack.c.h.b16 %v585
        %v867 = vunpack.c.l.b16 %v586
        %v868 = vunpack.c.h.b16 %v586
        %v869 = vunpack.c.l.b16 %v587
        %v870 = vunpack.c.h.b16 %v587
        %v871 = vunpack.c.l.b16 %v588
        %v872 = vunpack.c.h.b16 %v588
        %v873 = vunpack.c.l.b16 %v589
        %v874 = vunpack.c.h.b16 %v589
        %v875 = vunpack.c.l.b16 %v590
        %v876 = vunpack.c.h.b16 %v590
        %v877 = vunpack.c.l.b16 %v591
        %v878 = vunpack.c.h.b16 %v591
        %v879 = vunpack.c.l.b16 %v592
        %v880 = vunpack.c.h.b16 %v592
        %v881 = vunpack.c.l.b16 %v593
        %v882 = vunpack.c.h.b16 %v593
        %v883 = vunpack.c.l.b16 %v594
        %v884 = vunpack.c.h.b16 %v594
        %v885 = vunpack.c.l.b16 %v595
        %v886 = vunpack.c.h.b16 %v595
        %v887 = vunpack.c.l.b16 %v596
        %v888 = vunpack.c.h.b16 %v596
        %v889 = vunpack.c.l.b16 %v597
        %v890 = vunpack.c.h.b16 %v597
        %v891 = vunpack.c.l.b16 %v598
        %v892 = vunpack.c.h.b16 %v598
        %v893 = vunpack.c.l.b16 %v599
        %v894 = vunpack.c.h.b16 %v599
        %v895 = vunpack.c.l.b16 %v600
        %v896 = vunpack.c.h.b16 %v600
        %v897 = vunpack.c.l.b16 %v601
        %v898 = vunpack.c.h.b16 %v601
        %v899 = vunpack.c.l.b16 %v602
        %v900 = vunpack.c.h.b16 %v602
        %v901 = vunpack.c.l.b16 %v603
        %v902 = vunpack.c.h.b16 %v603
        %v903 = vunpack.c.l.b16 %v604
        %v904 = vunpack.c.h.b16 %v604
        %v905 = vunpack.c.l.b16 %v605
        %v906 = vunpack.c.h.b16 %v605
        %v907 = vunpack.c.l.b16 %v606
        %v908 = vunpack.c.h.b16 %v606
        %v909 = vunpack.c.l.b16 %v607
        %v910 = vunpack.c.h.b16 %v607
        %v911 = vunpack.c.l.b16 %v608
        %v912 = vunpack.c.h.b16 %v608
        %v913 = vunpack.c.l.b16 %v609
        %v914 = vunpack.c.h.b16 %v609
        %v915 = vunpack.c.l.b16 %v610
        %v916 = vunpack.c.h.b16 %v610
        %v917 = vunpack.c.l.b16 %v611
        %v918 = vunpack.c.h.b16 %v611
        %v919 = vunpack.c.l.b16 %v612
        %v920 = vunpack.c.h.b16 %v612
        %v921 = vunpack.c.l.b16 %v613
        %v922 = vunpack.c.h.b16 %v613
        %v923 = vunpack.c.l.b16 %v614
        %v924 = vunpack.c.h.b16 %v614
        %v925 = vunpack.c.l.b16 %v615
        %v926 = vunpack.c.h.b16 %v615
        %v927 = vunpack.c.l.b16 %v616
        %v928 = vunpack.c.h.b16 %v616
        %v929 = vunpack.c.l.b16 %v617
        %v930 = vunpack.c.h.b16 %v617
        %v931 = vunpack.c.l.b16 %v618
        %v932 = vunpack.c.h.b16 %v618
        %v933 = vunpack.c.l.b16 %v619
        %v934 = vunpack.c.h.b16 %v619
        %v935 = vunpack.c.l.b16 %v620
        %v936 = vunpack.c.h.b16 %v620
        %v937 = vunpack.c.l.b16 %v621
        %v938 = vunpack.c.h.b16 %v621
        %v939 = vunpack.c.l.b16 %v622
        %v940 = vunpack.c.h.b16 %v622
        %v941 = vunpack.c.l.b16 %v623
        %v942 = vunpack.c.h.b16 %v623
        %v943 = vunpack.c.l.b16 %v624
        %v944 = vunpack.c.h.b16 %v624
        %v945 = vunpack.c.l.b16 %v625
        %v946 = vunpack.c.h.b16 %v625
        %v947 = vunpack.c.l.b16 %v626
        %v948 = vunpack.c.h.b16 %v626
        %v949 = vunpack.c.l.b16 %v627
        %v950 = vunpack.c.h.b16 %v627
        %v951 = vunpack.c.l.b16 %v628
        %v952 = vunpack.c.h.b16 %v628
        %v953 = vunpack.c.l.b16 %v629
        %v954 = vunpack.c.h.b16 %v629
        %v955 = vunpack.c.l.b16 %v630
        %v956 = vunpack.c.h.b16 %v630
        %v957 = vunpack.c.l.b16 %v631
        %v958 = vunpack.c.h.b16 %v631
        %v959 = vunpack.c.l.b16 %v632
        %v960 = vunpack.c.h.b16 %v632
        %v961 = vunpack.c.l.b16 %v633
        %v962 = vunpack.c.h.b16 %v633
        %v963 = vunpack.c.l.b16 %v634
        %v964 = vunpack.c.h.b16 %v634
        %v965 = vpack.c.b16 %v779, %v773
        %v966 = vpack.c.b16 %v780, %v774
        %v967 = vpack.c.b16 %v781, %v775
        %v968 = vpack.c.b16 %v782, %v776
        %v969 = vpack.c.b16 %v783, %v777
        %v970 = vpack.c.b16 %v784, %v778
        %v971 = vpack.c.b16 %v791, %v785
        %v972 = vpack.c.b16 %v792, %v786
        %v973 = vpack.c.b16 %v793, %v787
        %v974 = vpack.c.b16 %v794, %v788
        %v975 = vpack.c.b16 %v795, %v789
        %v976 = vpack.c.b16 %v796, %v790
        %v977 = vpack.c.b16 %v803, %v797
        %v978 = vpack.c.b16 %v804, %v798
        %v979 = vpack.c.b16 %v805, %v799
        %v980 = vpack.c.b16 %v806, %v800
        %v981 = vpack.c.b16 %v807, %v801
        %v982 = vpack.c.b16 %v808, %v802
        %v983 = vpack.c.b16 %v815, %v809
        %v984 = vpack.c.b16 %v816, %v810
        %v985 = vpack.c.b16 %v817, %v811
        %v986 = vpack.c.b16 %v818, %v812
        %v987 = vpack.c.b16 %v819, %v813
        %v988 = vpack.c.b16 %v820, %v814
        %v989 = vpack.c.b16 %v827, %v821
        %v990 = vpack.c.b16 %v828, %v822
        %v991 = vpack.c.b16 %v829, %v823
        %v992 = vpack.c.b16 %v830, %v824
        %v993 = vpack.c.b16 %v831, %v825
        %v994 = vpack.c.b16 %v832, %v826
        %v995 = vpack.c.b16 %v839, %v833
        %v996 = vpack.c.b16 %v840, %v834
        %v997 = vpack.c.b16 %v841, %v835
        %v998 = vpack.c.b16 %v842, %v836
        %v999 = vpack.c.b16 %v843, %v837
        %v1000 = vpack.c.b16 %v844, %v838
        %v1001 = vpack.c.b16 %v851, %v845
        %v1002 = vpack.c.b16 %v852, %v846
        %v1003 = vpack.c.b16 %v853, %v847
        %v1004 = vpack.c.b16 %v854, %v848
        %v1005 = vpack.c.b16 %v855, %v849
        %v1006 = vpack.c.b16 %v856, %v850
        %v1007 = vpack.c.b16 %v863, %v857
        %v1008 = vpack.c.b16 %v864, %v858
        %v1009 = vpack.c.b16 %v865, %v859
        %v1010 = vpack.c.b16 %v866, %v860
        %v1011 = vpack.c.b16 %v867, %v861
        %v1012 = vpack.c.b16 %v868, %v862
        %v1013 = vpack.c.b16 %v875, %v869
        %v1014 = vpack.c.b16 %v876, %v870
        %v1015 = vpack.c.b16 %v877, %v871
        %v1016 = vpack.c.b16 %v878, %v872
        %v1017 = vpack.c.b16 %v879, %v873
        %v1018 = vpack.c.b16 %v880, %v874
        %v1019 = vpack.c.b16 %v887, %v881
        %v1020 = vpack.c.b16 %v888, %v882
        %v1021 = vpack.c.b16 %v889, %v883
        %v1022 = vpack.c.b16 %v890, %v884
        %v1023 = vpack.c.b16 %v891, %v885
        %v1024 = vpack.c.b16 %v892, %v886
        %v1025 = vpack.c.b16 %v899, %v893
        %v1026 = vpack.c.b16 %v900, %v894
        %v1027 = vpack.c.b16 %v901, %v895
        %v1028 = vpack.c.b16 %v902, %v896
        %v1029 = vpack.c.b16 %v903, %v897
        %v1030 = vpack.c.b16 %v904, %v898
        %v1031 = vpack.c.b16 %v911, %v905
        %v1032 = vpack.c.b16 %v912, %v906
        %v1033 = vpack.c.b16 %v913, %v907
        %v1034 = vpack.c.b16 %v914, %v908
        %v1035 = vpack.c.b16 %v915, %v909
        %v1036 = vpack.c.b16 %v916, %v910
        %v1037 = vpack.c.b16 %v923, %v917
        %v1038 = vpack.c.b16 %v924, %v918
        %v1039 = vpack.c.b16 %v925, %v919
        %v1040 = vpack.c.b16 %v926, %v920
        %v1041 = vpack.c.b16 %v927, %v921
        %v1042 = vpack.c.b16 %v928, %v922
        %v1043 = vpack.c.b16 %v935, %v929
        %v1044 = vpack.c.b16 %v936, %v930
        %v1045 = vpack.c.b16 %v937, %v931
        %v1046 = vpack.c.b16 %v938, %v932
        %v1047 = vpack.c.b16 %v939, %v933
        %v1048 = vpack.c.b16 %v940, %v934
        %v1049 = vpack.c.b16 %v947, %v941
        %v1050 = vpack.c.b16 %v948, %v942
        %v1051 = vpack.c.b16 %v949, %v943
        %v1052 = vpack.c.b16 %v950, %v944
        %v1053 = vpack.c.b16 %v951, %v945
        %v1054 = vpack.c.b16 %v952, %v946
        %v1055 = vpack.c.b16 %v959, %v953
        %v1056 = vpack.c.b16 %v960, %v954
        %v1057 = vpack.c.b16 %v961, %v955
        %v1058 = vpack.c.b16 %v962, %v956
        %v1059 = vpack.c.b16 %v963, %v957
        %v1060 = vpack.c.b16 %v964, %v958
        %1157 = vmatprep.subr.bf16.mxu0 %v966
        %1158 = vmatpush1.bf16.msra.mxu0 %v965
        %1159 = vmatprep.subr.bf16.mxu0 %v972
        %1160 = vmatpush1.bf16.msra.mxu0 %v971
        %1161 = vmatprep.subr.bf16.mxu0 %v978
        %1162 = vmatpush1.bf16.msra.mxu0 %v977
        %1163 = vmatprep.subr.bf16.mxu0 %v984
        %1164 = vmatpush1.bf16.msra.mxu0 %v983
        %1165 = vmatprep.subr.bf16.mxu0 %v990
        %1166 = vmatpush1.bf16.msra.mxu0 %v989
        %1167 = vmatprep.subr.bf16.mxu0 %v996
        %1168 = vmatpush1.bf16.msra.mxu0 %v995
        %1169 = vmatprep.subr.bf16.mxu0 %v1002
        %1170 = vmatpush1.bf16.msra.mxu0 %v1001
        %1171 = vmatprep.subr.bf16.mxu0 %v1008
        %1172 = vmatpush1.bf16.msra.mxu0 %v1007
        %1173 = vmatprep.subr.bf16.mxu0 %v1014
        %1174 = vmatpush1.bf16.msra.mxu0 %v1013
        %1175 = vmatprep.subr.bf16.mxu0 %v1020
        %1176 = vmatpush1.bf16.msra.mxu0 %v1019
        %1177 = vmatprep.subr.bf16.mxu0 %v1026
        %1178 = vmatpush1.bf16.msra.mxu0 %v1025
        %1179 = vmatprep.subr.bf16.mxu0 %v1032
        %1180 = vmatpush1.bf16.msra.mxu0 %v1031
        %1181 = vmatprep.subr.bf16.mxu0 %v1038
        %1182 = vmatpush1.bf16.msra.mxu0 %v1037
        %1183 = vmatprep.subr.bf16.mxu0 %v1044
        %1184 = vmatpush1.bf16.msra.mxu0 %v1043
        %1185 = vmatprep.subr.bf16.mxu0 %v1050
        %1186 = vmatpush1.bf16.msra.mxu0 %v1049
        %1187 = vmatprep.subr.bf16.mxu0 %v1056
        %1188 = vmatpush1.bf16.msra.mxu0 %v1055
        %1189 = vmatprep.mubr.bf16.mxu0 %v674
        %1190 = vmatmul.mubr.bf16.gmra.mrb[0].mxu0 %v673
        %v1191 = vpop.f32.mrb[0].mxu0
        %v1192 = vadd.f32 %v640, %v1191
        %v1193 = vpop.f32.mrb[0].mxu0
        %v1194 = vadd.f32 %v644, %v1193
        %v1195 = vpop.f32.mrb[0].mxu0
        %v1196 = vadd.f32 %v640, %v1195
        %v1197 = vpop.f32.mrb[0].mxu0
        %v1198 = vadd.f32 %v644, %v1197
        %1199 = vdwg.mxu0
        %1200 = vmatprep.subr.bf16.mxu0 %v968
        %1201 = vmatpush1.bf16.msra.mxu0 %v967
        %1202 = vmatprep.subr.bf16.mxu0 %v974
        %1203 = vmatpush1.bf16.msra.mxu0 %v973
        %1204 = vmatprep.subr.bf16.mxu0 %v980
        %1205 = vmatpush1.bf16.msra.mxu0 %v979
        %1206 = vmatprep.subr.bf16.mxu0 %v986
        %1207 = vmatpush1.bf16.msra.mxu0 %v985
        %1208 = vmatprep.subr.bf16.mxu0 %v992
        %1209 = vmatpush1.bf16.msra.mxu0 %v991
        %1210 = vmatprep.subr.bf16.mxu0 %v998
        %1211 = vmatpush1.bf16.msra.mxu0 %v997
        %1212 = vmatprep.subr.bf16.mxu0 %v1004
        %1213 = vmatpush1.bf16.msra.mxu0 %v1003
        %1214 = vmatprep.subr.bf16.mxu0 %v1010
        %1215 = vmatpush1.bf16.msra.mxu0 %v1009
        %1216 = vmatprep.subr.bf16.mxu0 %v1016
        %1217 = vmatpush1.bf16.msra.mxu0 %v1015
        %1218 = vmatprep.subr.bf16.mxu0 %v1022
        %1219 = vmatpush1.bf16.msra.mxu0 %v1021
        %1220 = vmatprep.subr.bf16.mxu0 %v1028
        %1221 = vmatpush1.bf16.msra.mxu0 %v1027
        %1222 = vmatprep.subr.bf16.mxu0 %v1034
        %1223 = vmatpush1.bf16.msra.mxu0 %v1033
        %1224 = vmatprep.subr.bf16.mxu0 %v1040
        %1225 = vmatpush1.bf16.msra.mxu0 %v1039
        %1226 = vmatprep.subr.bf16.mxu0 %v1046
        %1227 = vmatpush1.bf16.msra.mxu0 %v1045
        %1228 = vmatprep.subr.bf16.mxu0 %v1052
        %1229 = vmatpush1.bf16.msra.mxu0 %v1051
        %1230 = vmatprep.subr.bf16.mxu0 %v1058
        %1231 = vmatpush1.bf16.msra.mxu0 %v1057
        %1232 = vmatprep.mubr.bf16.mxu0 %v674
        %1233 = vmatmul.mubr.bf16.gmra.mrb[0].mxu0 %v673
        %v1234 = vpop.f32.mrb[0].mxu0
        %v1235 = vadd.f32 %v648, %v1234
        %v1236 = vpop.f32.mrb[0].mxu0
        %v1237 = vadd.f32 %v652, %v1236
        %v1238 = vpop.f32.mrb[0].mxu0
        %v1239 = vadd.f32 %v648, %v1238
        %v1240 = vpop.f32.mrb[0].mxu0
        %v1241 = vadd.f32 %v652, %v1240
        %1242 = vdwg.mxu0
        %1243 = vmatprep.subr.bf16.mxu0 %v970
        %1244 = vmatpush1.bf16.msra.mxu0 %v969
        %1245 = vmatprep.subr.bf16.mxu0 %v976
        %1246 = vmatpush1.bf16.msra.mxu0 %v975
        %1247 = vmatprep.subr.bf16.mxu0 %v982
        %1248 = vmatpush1.bf16.msra.mxu0 %v981
        %1249 = vmatprep.subr.bf16.mxu0 %v988
        %1250 = vmatpush1.bf16.msra.mxu0 %v987
        %1251 = vmatprep.subr.bf16.mxu0 %v994
        %1252 = vmatpush1.bf16.msra.mxu0 %v993
        %1253 = vmatprep.subr.bf16.mxu0 %v1000
        %1254 = vmatpush1.bf16.msra.mxu0 %v999
        %1255 = vmatprep.subr.bf16.mxu0 %v1006
        %1256 = vmatpush1.bf16.msra.mxu0 %v1005
        %1257 = vmatprep.subr.bf16.mxu0 %v1012
        %1258 = vmatpush1.bf16.msra.mxu0 %v1011
        %1259 = vmatprep.subr.bf16.mxu0 %v1018
        %1260 = vmatpush1.bf16.msra.mxu0 %v1017
        %1261 = vmatprep.subr.bf16.mxu0 %v1024
        %1262 = vmatpush1.bf16.msra.mxu0 %v1023
        %1263 = vmatprep.subr.bf16.mxu0 %v1030
        %1264 = vmatpush1.bf16.msra.mxu0 %v1029
        %1265 = vmatprep.subr.bf16.mxu0 %v1036
        %1266 = vmatpush1.bf16.msra.mxu0 %v1035
        %1267 = vmatprep.subr.bf16.mxu0 %v1042
        %1268 = vmatpush1.bf16.msra.mxu0 %v1041
        %1269 = vmatprep.subr.bf16.mxu0 %v1048
        %1270 = vmatpush1.bf16.msra.mxu0 %v1047
        %1271 = vmatprep.subr.bf16.mxu0 %v1054
        %1272 = vmatpush1.bf16.msra.mxu0 %v1053
        %1273 = vmatprep.subr.bf16.mxu0 %v1060
        %1274 = vmatpush1.bf16.msra.mxu0 %v1059
        %1275 = vmatprep.mubr.bf16.mxu0 %v674
        %1276 = vmatmul.mubr.bf16.gmra.mrb[0].mxu0 %v673
        %v1277 = vpop.f32.mrb[0].mxu0
        %v1278 = vadd.f32 %v656, %v1277
        %v1279 = vpop.f32.mrb[0].mxu0
        %v1280 = vadd.f32 %v660, %v1279
        %v1281 = vpop.f32.mrb[0].mxu0
        %v1282 = vadd.f32 %v656, %v1281
        %v1283 = vpop.f32.mrb[0].mxu0
        %v1284 = vadd.f32 %v660, %v1283
        %1285 = vdwg.mxu0
        %v1286 = vpack.c.bf16 %v1196, %v1192
        %v1287 = vpack.c.bf16 %v1198, %v1194
        %v1288 = vpack.c.bf16 %v1239, %v1235
        %v1289 = vpack.c.bf16 %v1241, %v1237
        %v1290 = vpack.c.bf16 %v1282, %v1278
        %v1291 = vpack.c.bf16 %v1284, %v1280
        %v1292 = vld [vmem:[%s468] sm:$0x3]
        %v1293 = vld [vmem:[%s468 + $0x2] sm:$0x3]
        %vm1294 = vnez %v1292
        %vm1295 = vnez %v1293
        %1296 = vmatprep.subr.bf16.mxu0 0
        %1297 = vmatpush1.bf16.xpose.msra.mxu0 %v1288
        %1298 = vmatprep.subr.bf16.mxu0 0
        %1299 = vmatpush1.bf16.xpose.msra.mxu0 0
        %1300 = vmatprep.subr.bf16.mxu0 0
        %1301 = vmatpush1.bf16.xpose.msra.mxu0 0
        %1302 = vmatprep.subr.bf16.mxu0 0
        %1303 = vmatpush1.bf16.xpose.msra.mxu0 0
        %1304 = vmatprep.subr.bf16.mxu0 0
        %1305 = vmatpush1.bf16.xpose.msra.mxu0 0
        %1306 = vmatprep.subr.bf16.mxu0 0
        %1307 = vmatpush1.bf16.xpose.msra.mxu0 0
        %1308 = vmatprep.subr.bf16.mxu0 0
        %1309 = vmatpush1.bf16.xpose.msra.mxu0 0
        %1310 = vmatprep.subr.bf16.mxu0 0
        %1311 = vmatpush1.bf16.xpose.msra.mxu0 0
        %1312 = vmatprep.subr.bf16.mxu0 0
        %1313 = vmatpush1.bf16.xpose.msra.mxu0 0
        %1314 = vmatprep.subr.bf16.mxu0 0
        %1315 = vmatpush1.bf16.xpose.msra.mxu0 0
        %1316 = vmatprep.subr.bf16.mxu0 0
        %1317 = vmatpush1.bf16.xpose.msra.mxu0 0
        %1318 = vmatprep.subr.bf16.mxu0 0
        %1319 = vmatpush1.bf16.xpose.msra.mxu0 0
        %1320 = vmatprep.subr.bf16.mxu0 0
        %1321 = vmatpush1.bf16.xpose.msra.mxu0 0
        %1322 = vmatprep.subr.bf16.mxu0 0
        %1323 = vmatpush1.bf16.xpose.msra.mxu0 0
        %1324 = vmatprep.subr.bf16.mxu0 0
        %1325 = vmatpush1.bf16.xpose.msra.mxu0 0
        %1326 = vmatprep.subr.bf16.mxu0 0
        %1327 = vmatpush1.bf16.xpose.msra.mxu0 0
        %1328 = vmatprep.mubr.bf16.mxu0 0
        %1329 = vmatmul.mubr.bf16.gmra.mrb[0].mxu0 %v1286
        %v1330 = vpop.f32.mrb[0].mxu0
        %v1331 = vadd.f32 0.0, %v1330
        %v1332 = vpop.f32.mrb[0].mxu0
        %v1333 = vpop.f32.mrb[0].mxu0
        %v1334 = vadd.f32 0.0, %v1333
        %v1335 = vpop.f32.mrb[0].mxu0
        %1336 = vdwg.mxu0
        %v1337 = vmul.f32 %v1331, 0.088388346
        %v1338 = vmul.f32 %v1334, 0.088388346
        %v1339 = vsel %vm1294, 16843009, 0
        %v1340 = vsel %vm1295, 16843009, 0
        %v1341 = vunpack.c.0.s8 %v1339
        %v1342 = vunpack.c.0.s8 %v1340
        %vm1343 = vcmp.ne.s32.totalorder %v1341, 0
        %vm1344 = vcmp.ne.s32.totalorder %v1342, 0
        %v1345 = vsel %vm1343, -1e+09, %v1337
        %v1346 = vsel %vm1344, -1e+09, %v1338
        %vm1347 = vcmask 130048
        %v1348 = vsel %vm1347, %v1345, -inf
        %1349 = vmax.xlane.f32.xlu0 %v1348
        %v1350 = vpop.xlane.xlu0 %1349
        %v1351 = vsel %vm1347, %v1346, -inf
        %1352 = vmax.xlane.f32.xlu0 %v1351
        %v1353 = vpop.xlane.xlu0 %1352
        %v1354 = vsub.f32 %v1345, %v1350
        %v1355 = vsub.f32 %v1346, %v1353
        %v1356 = vmul.f32 %v1354, 1.442695
        %v1357 = vpow.pop %v1356
        %v1358 = vmul.f32 %v1355, 1.442695
        %v1359 = vpow.pop %v1358
        %v1360 = vsel %vm1347, %v1357, 0.0
        %1361 = vadd.xlane.f32.xlu0 %v1360
        %v1362 = vpop.xlane.xlu0 %1361
        %v1363 = vsel %vm1347, %v1359, 0.0
        %1364 = vadd.xlane.f32.xlu0 %v1363
        %v1365 = vpop.xlane.xlu0 %1364
        %v1366 = vrcp.pop %v1362
        %v1367 = vrcp.pop %v1365
        %v1368 = vmul.f32 %v1357, %v1366
        %v1369 = vmul.f32 %v1359, %v1367
        %v1370 = vpack.c.bf16 %v1369, %v1368
        %v1372 = vsel %vm1347, %v1370, 0
        %1374 = vmatprep.subr.bf16.mxu0 0
        %1375 = vmatpush1.bf16.msra.mxu0 %v1290
        %1376 = vmatprep.subr.bf16.mxu0 0
        %1377 = vmatpush1.bf16.msra.mxu0 0
        %1378 = vmatprep.subr.bf16.mxu0 0
        %1379 = vmatpush1.bf16.msra.mxu0 0
        %1380 = vmatprep.subr.bf16.mxu0 0
        %1381 = vmatpush1.bf16.msra.mxu0 0
        %1382 = vmatprep.subr.bf16.mxu0 0
        %1383 = vmatpush1.bf16.msra.mxu0 0
        %1384 = vmatprep.subr.bf16.mxu0 0
        %1385 = vmatpush1.bf16.msra.mxu0 0
        %1386 = vmatprep.subr.bf16.mxu0 0
        %1387 = vmatpush1.bf16.msra.mxu0 0
        %1388 = vmatprep.subr.bf16.mxu0 0
        %1389 = vmatpush1.bf16.msra.mxu0 0
        %1390 = vmatprep.subr.bf16.mxu0 0
        %1391 = vmatpush1.bf16.msra.mxu0 0
        %1392 = vmatprep.subr.bf16.mxu0 0
        %1393 = vmatpush1.bf16.msra.mxu0 0
        %1394 = vmatprep.subr.bf16.mxu0 0
        %1395 = vmatpush1.bf16.msra.mxu0 0
        %1396 = vmatprep.subr.bf16.mxu0 0
        %1397 = vmatpush1.bf16.msra.mxu0 0
        %1398 = vmatprep.subr.bf16.mxu0 0
        %1399 = vmatpush1.bf16.msra.mxu0 0
        %1400 = vmatprep.subr.bf16.mxu0 0
        %1401 = vmatpush1.bf16.msra.mxu0 0
        %1402 = vmatprep.subr.bf16.mxu0 0
        %1403 = vmatpush1.bf16.msra.mxu0 0
        %1404 = vmatprep.subr.bf16.mxu0 0
        %1405 = vmatpush1.bf16.msra.mxu0 0
        %1406 = vmatprep.mubr.bf16.mxu0 0
        %1407 = vmatmul.mubr.bf16.gmra.mrb[0].mxu0 %v1372
        %v1408 = vpop.f32.mrb[0].mxu0
        %v1409 = vadd.f32 0.0, %v1408
        %v1410 = vpop.f32.mrb[0].mxu0
        %v1411 = vpop.f32.mrb[0].mxu0
        %v1412 = vadd.f32 0.0, %v1411
        %v1413 = vpop.f32.mrb[0].mxu0
        %1414 = vdwg.mxu0
        %v1415 = vpack.c.bf16 %v1412, %v1409
        %1416 = vmatprep.subr.bf16.mxu0 0
        %1417 = vmatpush1.bf16.xpose.msra.mxu0 %v1289
        %1418 = vmatprep.subr.bf16.mxu0 0
        %1419 = vmatpush1.bf16.xpose.msra.mxu0 0
        %1420 = vmatprep.subr.bf16.mxu0 0
        %1421 = vmatpush1.bf16.xpose.msra.mxu0 0
        %1422 = vmatprep.subr.bf16.mxu0 0
        %1423 = vmatpush1.bf16.xpose.msra.mxu0 0
        %1424 = vmatprep.subr.bf16.mxu0 0
        %1425 = vmatpush1.bf16.xpose.msra.mxu0 0
        %1426 = vmatprep.subr.bf16.mxu0 0
        %1427 = vmatpush1.bf16.xpose.msra.mxu0 0
        %1428 = vmatprep.subr.bf16.mxu0 0
        %1429 = vmatpush1.bf16.xpose.msra.mxu0 0
        %1430 = vmatprep.subr.bf16.mxu0 0
        %1431 = vmatpush1.bf16.xpose.msra.mxu0 0
        %1432 = vmatprep.subr.bf16.mxu0 0
        %1433 = vmatpush1.bf16.xpose.msra.mxu0 0
        %1434 = vmatprep.subr.bf16.mxu0 0
        %1435 = vmatpush1.bf16.xpose.msra.mxu0 0
        %1436 = vmatprep.subr.bf16.mxu0 0
        %1437 = vmatpush1.bf16.xpose.msra.mxu0 0
        %1438 = vmatprep.subr.bf16.mxu0 0
        %1439 = vmatpush1.bf16.xpose.msra.mxu0 0
        %1440 = vmatprep.subr.bf16.mxu0 0
        %1441 = vmatpush1.bf16.xpose.msra.mxu0 0
        %1442 = vmatprep.subr.bf16.mxu0 0
        %1443 = vmatpush1.bf16.xpose.msra.mxu0 0
        %1444 = vmatprep.subr.bf16.mxu0 0
        %1445 = vmatpush1.bf16.xpose.msra.mxu0 0
        %1446 = vmatprep.subr.bf16.mxu0 0
        %1447 = vmatpush1.bf16.xpose.msra.mxu0 0
        %1448 = vmatprep.mubr.bf16.mxu0 0
        %1449 = vmatmul.mubr.bf16.gmra.mrb[0].mxu0 %v1287
        %v1450 = vpop.f32.mrb[0].mxu0
        %v1451 = vadd.f32 0.0, %v1450
        %v1452 = vpop.f32.mrb[0].mxu0
        %v1453 = vpop.f32.mrb[0].mxu0
        %v1454 = vadd.f32 0.0, %v1453
        %v1455 = vpop.f32.mrb[0].mxu0
        %1456 = vdwg.mxu0
        %v1457 = vmul.f32 %v1451, 0.088388346
        %v1458 = vmul.f32 %v1454, 0.088388346
        %v1459 = vsel %vm1343, -1e+09, %v1457
        %v1460 = vsel %vm1344, -1e+09, %v1458
        %v1461 = vsel %vm1347, %v1459, -inf
        %1462 = vmax.xlane.f32.xlu0 %v1461
        %v1463 = vpop.xlane.xlu0 %1462
        %v1464 = vsel %vm1347, %v1460, -inf
        %1465 = vmax.xlane.f32.xlu0 %v1464
        %v1466 = vpop.xlane.xlu0 %1465
        %v1467 = vsub.f32 %v1459, %v1463
        %v1468 = vsub.f32 %v1460, %v1466
        %v1469 = vmul.f32 %v1467, 1.442695
        %v1470 = vpow.pop %v1469
        %v1471 = vmul.f32 %v1468, 1.442695
        %v1472 = vpow.pop %v1471
        %v1473 = vsel %vm1347, %v1470, 0.0
        %1474 = vadd.xlane.f32.xlu0 %v1473
        %v1475 = vpop.xlane.xlu0 %1474
        %v1476 = vsel %vm1347, %v1472, 0.0
        %1477 = vadd.xlane.f32.xlu0 %v1476
        %v1478 = vpop.xlane.xlu0 %1477
        %v1479 = vrcp.pop %v1475
        %v1480 = vrcp.pop %v1478
        %v1481 = vmul.f32 %v1470, %v1479
        %v1482 = vmul.f32 %v1472, %v1480
        %v1483 = vpack.c.bf16 %v1482, %v1481
        %v1485 = vsel %vm1347, %v1483, 0
        %1487 = vmatprep.subr.bf16.mxu0 0
        %1488 = vmatpush1.bf16.msra.mxu0 %v1291
        %1489 = vmatprep.subr.bf16.mxu0 0
        %1490 = vmatpush1.bf16.msra.mxu0 0
        %1491 = vmatprep.subr.bf16.mxu0 0
        %1492 = vmatpush1.bf16.msra.mxu0 0
        %1493 = vmatprep.subr.bf16.mxu0 0
        %1494 = vmatpush1.bf16.msra.mxu0 0
        %1495 = vmatprep.subr.bf16.mxu0 0
        %1496 = vmatpush1.bf16.msra.mxu0 0
        %1497 = vmatprep.subr.bf16.mxu0 0
        %1498 = vmatpush1.bf16.msra.mxu0 0
        %1499 = vmatprep.subr.bf16.mxu0 0
        %1500 = vmatpush1.bf16.msra.mxu0 0
        %1501 = vmatprep.subr.bf16.mxu0 0
        %1502 = vmatpush1.bf16.msra.mxu0 0
        %1503 = vmatprep.subr.bf16.mxu0 0
        %1504 = vmatpush1.bf16.msra.mxu0 0
        %1505 = vmatprep.subr.bf16.mxu0 0
        %1506 = vmatpush1.bf16.msra.mxu0 0
        %1507 = vmatprep.subr.bf16.mxu0 0
        %1508 = vmatpush1.bf16.msra.mxu0 0
        %1509 = vmatprep.subr.bf16.mxu0 0
        %1510 = vmatpush1.bf16.msra.mxu0 0
        %1511 = vmatprep.subr.bf16.mxu0 0
        %1512 = vmatpush1.bf16.msra.mxu0 0
        %1513 = vmatprep.subr.bf16.mxu0 0
        %1514 = vmatpush1.bf16.msra.mxu0 0
        %1515 = vmatprep.subr.bf16.mxu0 0
        %1516 = vmatpush1.bf16.msra.mxu0 0
        %1517 = vmatprep.subr.bf16.mxu0 0
        %1518 = vmatpush1.bf16.msra.mxu0 0
        %1519 = vmatprep.mubr.bf16.mxu0 0
        %1520 = vmatmul.mubr.bf16.gmra.mrb[0].mxu0 %v1485
        %v1521 = vpop.f32.mrb[0].mxu0
        %v1522 = vadd.f32 0.0, %v1521
        %v1523 = vpop.f32.mrb[0].mxu0
        %v1524 = vpop.f32.mrb[0].mxu0
        %v1525 = vadd.f32 0.0, %v1524
        %v1526 = vpop.f32.mrb[0].mxu0
        %1527 = vdwg.mxu0
        %v1528 = vpack.c.bf16 %v1525, %v1522
        %v1529 = vld [vmem:[#allocation8] sm:$0xff]
        %v1530 = vld [vmem:[#allocation8 + $0x8] sm:$0xff]
        %v1531 = vld [vmem:[#allocation8 + $0x10] sm:$0xff]
        %v1532 = vld [vmem:[#allocation8 + $0x18] sm:$0xff]
        %v1533 = vld [vmem:[#allocation8 + $0x20] sm:$0xff]
        %v1534 = vld [vmem:[#allocation8 + $0x28] sm:$0xff]
        %v1535 = vld [vmem:[#allocation8 + $0x30] sm:$0xff]
        %v1536 = vld [vmem:[#allocation8 + $0x38] sm:$0xff]
        %v1537 = vld [vmem:[#allocation8 + $0x40] sm:$0xff]
        %v1538 = vld [vmem:[#allocation8 + $0x48] sm:$0xff]
        %v1539 = vld [vmem:[#allocation8 + $0x50] sm:$0xff]
        %v1540 = vld [vmem:[#allocation8 + $0x58] sm:$0xff]
        %v1541 = vld [vmem:[#allocation8 + $0x60] sm:$0xff]
        %v1542 = vld [vmem:[#allocation8 + $0x68] sm:$0xff]
        %v1543 = vld [vmem:[#allocation8 + $0x70] sm:$0xff]
        %v1544 = vld [vmem:[#allocation8 + $0x78] sm:$0xff]
        %v1545 = vld [vmem:[#allocation8 + $0x80] sm:$0xff]
        %v1546 = vld [vmem:[#allocation8 + $0x88] sm:$0xff]
        %v1547 = vld [vmem:[#allocation8 + $0x90] sm:$0xff]
        %v1548 = vld [vmem:[#allocation8 + $0x98] sm:$0xff]
        %v1549 = vld [vmem:[#allocation8 + $0xa0] sm:$0xff]
        %v1550 = vld [vmem:[#allocation8 + $0xa8] sm:$0xff]
        %v1551 = vld [vmem:[#allocation8 + $0xb0] sm:$0xff]
        %v1552 = vld [vmem:[#allocation8 + $0xb8] sm:$0xff]
        %v1553 = vld [vmem:[#allocation8 + $0xc0] sm:$0xff]
        %v1554 = vld [vmem:[#allocation8 + $0xc8] sm:$0xff]
        %v1555 = vld [vmem:[#allocation8 + $0xd0] sm:$0xff]
        %v1556 = vld [vmem:[#allocation8 + $0xd8] sm:$0xff]
        %v1557 = vld [vmem:[#allocation8 + $0xe0] sm:$0xff]
        %v1558 = vld [vmem:[#allocation8 + $0xe8] sm:$0xff]
        %v1559 = vld [vmem:[#allocation8 + $0xf0] sm:$0xff]
        %v1560 = vld [vmem:[#allocation8 + $0xf8] sm:$0xff]
        %v1561 = vld [vmem:[%s5] sm:$0x3]
        %v1563 = vlaneseq
        %v1564 = vshrl.u32 %v1563, 7
        %v1565 = vsub.s32 0, %v1564
        %v1566 = vrot.slane %v1561, %v1565
        %v1567 = vlaneseq
        %v1568 = vshrl.u32 %v1567, 7
        %v1569 = vsub.s32 1, %v1568
        %v1570 = vrot.slane %v1561, %v1569
        %v1605 = vunpack.c.l.b16 %v1529
        %v1606 = vunpack.c.h.b16 %v1529
        %v1607 = vunpack.c.l.b16 %v1530
        %v1608 = vunpack.c.h.b16 %v1530
        %v1609 = vunpack.c.l.b16 %v1531
        %v1610 = vunpack.c.h.b16 %v1531
        %v1611 = vunpack.c.l.b16 %v1532
        %v1612 = vunpack.c.h.b16 %v1532
        %v1613 = vunpack.c.l.b16 %v1533
        %v1614 = vunpack.c.h.b16 %v1533
        %v1615 = vunpack.c.l.b16 %v1534
        %v1616 = vunpack.c.h.b16 %v1534
        %v1617 = vunpack.c.l.b16 %v1535
        %v1618 = vunpack.c.h.b16 %v1535
        %v1619 = vunpack.c.l.b16 %v1536
        %v1620 = vunpack.c.h.b16 %v1536
        %v1621 = vunpack.c.l.b16 %v1537
        %v1622 = vunpack.c.h.b16 %v1537
        %v1623 = vunpack.c.l.b16 %v1538
        %v1624 = vunpack.c.h.b16 %v1538
        %v1625 = vunpack.c.l.b16 %v1539
        %v1626 = vunpack.c.h.b16 %v1539
        %v1627 = vunpack.c.l.b16 %v1540
        %v1628 = vunpack.c.h.b16 %v1540
        %v1629 = vunpack.c.l.b16 %v1541
        %v1630 = vunpack.c.h.b16 %v1541
        %v1631 = vunpack.c.l.b16 %v1542
        %v1632 = vunpack.c.h.b16 %v1542
        %v1633 = vunpack.c.l.b16 %v1543
        %v1634 = vunpack.c.h.b16 %v1543
        %v1635 = vunpack.c.l.b16 %v1544
        %v1636 = vunpack.c.h.b16 %v1544
        %v1637 = vunpack.c.l.b16 %v1545
        %v1638 = vunpack.c.h.b16 %v1545
        %v1639 = vunpack.c.l.b16 %v1546
        %v1640 = vunpack.c.h.b16 %v1546
        %v1641 = vunpack.c.l.b16 %v1547
        %v1642 = vunpack.c.h.b16 %v1547
        %v1643 = vunpack.c.l.b16 %v1548
        %v1644 = vunpack.c.h.b16 %v1548
        %v1645 = vunpack.c.l.b16 %v1549
        %v1646 = vunpack.c.h.b16 %v1549
        %v1647 = vunpack.c.l.b16 %v1550
        %v1648 = vunpack.c.h.b16 %v1550
        %v1649 = vunpack.c.l.b16 %v1551
        %v1650 = vunpack.c.h.b16 %v1551
        %v1651 = vunpack.c.l.b16 %v1552
        %v1652 = vunpack.c.h.b16 %v1552
        %v1653 = vunpack.c.l.b16 %v1553
        %v1654 = vunpack.c.h.b16 %v1553
        %v1655 = vunpack.c.l.b16 %v1554
        %v1656 = vunpack.c.h.b16 %v1554
        %v1657 = vunpack.c.l.b16 %v1555
        %v1658 = vunpack.c.h.b16 %v1555
        %v1659 = vunpack.c.l.b16 %v1556
        %v1660 = vunpack.c.h.b16 %v1556
        %v1661 = vunpack.c.l.b16 %v1557
        %v1662 = vunpack.c.h.b16 %v1557
        %v1663 = vunpack.c.l.b16 %v1558
        %v1664 = vunpack.c.h.b16 %v1558
        %v1665 = vunpack.c.l.b16 %v1559
        %v1666 = vunpack.c.h.b16 %v1559
        %v1667 = vunpack.c.l.b16 %v1560
        %v1668 = vunpack.c.h.b16 %v1560
        %v1669 = vpack.c.b16 %v1607, %v1605
        %v1670 = vpack.c.b16 %v1608, %v1606
        %v1671 = vpack.c.b16 %v1611, %v1609
        %v1672 = vpack.c.b16 %v1612, %v1610
        %v1673 = vpack.c.b16 %v1615, %v1613
        %v1674 = vpack.c.b16 %v1616, %v1614
        %v1675 = vpack.c.b16 %v1619, %v1617
        %v1676 = vpack.c.b16 %v1620, %v1618
        %v1677 = vpack.c.b16 %v1623, %v1621
        %v1678 = vpack.c.b16 %v1624, %v1622
        %v1679 = vpack.c.b16 %v1627, %v1625
        %v1680 = vpack.c.b16 %v1628, %v1626
        %v1681 = vpack.c.b16 %v1631, %v1629
        %v1682 = vpack.c.b16 %v1632, %v1630
        %v1683 = vpack.c.b16 %v1635, %v1633
        %v1684 = vpack.c.b16 %v1636, %v1634
        %v1685 = vpack.c.b16 %v1639, %v1637
        %v1686 = vpack.c.b16 %v1640, %v1638
        %v1687 = vpack.c.b16 %v1643, %v1641
        %v1688 = vpack.c.b16 %v1644, %v1642
        %v1689 = vpack.c.b16 %v1647, %v1645
        %v1690 = vpack.c.b16 %v1648, %v1646
        %v1691 = vpack.c.b16 %v1651, %v1649
        %v1692 = vpack.c.b16 %v1652, %v1650
        %v1693 = vpack.c.b16 %v1655, %v1653
        %v1694 = vpack.c.b16 %v1656, %v1654
        %v1695 = vpack.c.b16 %v1659, %v1657
        %v1696 = vpack.c.b16 %v1660, %v1658
        %v1697 = vpack.c.b16 %v1663, %v1661
        %v1698 = vpack.c.b16 %v1664, %v1662
        %v1699 = vpack.c.b16 %v1667, %v1665
        %v1700 = vpack.c.b16 %v1668, %v1666
        %1733 = vmatprep.subr.bf16.mxu0 %v1670
        %1734 = vmatpush1.bf16.msra.mxu0 %v1669
        %1735 = vmatprep.subr.bf16.mxu0 %v1672
        %1736 = vmatpush1.bf16.msra.mxu0 %v1671
        %1737 = vmatprep.subr.bf16.mxu0 %v1674
        %1738 = vmatpush1.bf16.msra.mxu0 %v1673
        %1739 = vmatprep.subr.bf16.mxu0 %v1676
        %1740 = vmatpush1.bf16.msra.mxu0 %v1675
        %1741 = vmatprep.subr.bf16.mxu0 %v1678
        %1742 = vmatpush1.bf16.msra.mxu0 %v1677
        %1743 = vmatprep.subr.bf16.mxu0 %v1680
        %1744 = vmatpush1.bf16.msra.mxu0 %v1679
        %1745 = vmatprep.subr.bf16.mxu0 %v1682
        %1746 = vmatpush1.bf16.msra.mxu0 %v1681
        %1747 = vmatprep.subr.bf16.mxu0 %v1684
        %1748 = vmatpush1.bf16.msra.mxu0 %v1683
        %1749 = vmatprep.subr.bf16.mxu0 %v1686
        %1750 = vmatpush1.bf16.msra.mxu0 %v1685
        %1751 = vmatprep.subr.bf16.mxu0 %v1688
        %1752 = vmatpush1.bf16.msra.mxu0 %v1687
        %1753 = vmatprep.subr.bf16.mxu0 %v1690
        %1754 = vmatpush1.bf16.msra.mxu0 %v1689
        %1755 = vmatprep.subr.bf16.mxu0 %v1692
        %1756 = vmatpush1.bf16.msra.mxu0 %v1691
        %1757 = vmatprep.subr.bf16.mxu0 %v1694
        %1758 = vmatpush1.bf16.msra.mxu0 %v1693
        %1759 = vmatprep.subr.bf16.mxu0 %v1696
        %1760 = vmatpush1.bf16.msra.mxu0 %v1695
        %1761 = vmatprep.subr.bf16.mxu0 %v1698
        %1762 = vmatpush1.bf16.msra.mxu0 %v1697
        %1763 = vmatprep.subr.bf16.mxu0 %v1700
        %1764 = vmatpush1.bf16.msra.mxu0 %v1699
        %1765 = vmatprep.mubr.bf16.mxu0 %v1528
        %1766 = vmatmul.mubr.bf16.gmra.mrb[0].mxu0 %v1415
        %v1767 = vpop.f32.mrb[0].mxu0
        %v1768 = vadd.f32 %v1566, %v1767
        %v1769 = vpop.f32.mrb[0].mxu0
        %v1770 = vadd.f32 %v1570, %v1769
        %v1771 = vpop.f32.mrb[0].mxu0
        %v1772 = vadd.f32 %v1566, %v1771
        %v1773 = vpop.f32.mrb[0].mxu0
        %v1774 = vadd.f32 %v1570, %v1773
        %1775 = vdwg.mxu0
        %v1776 = vadd.f32 %v1768, %v535
        %v1777 = vadd.f32 %v1770, %v536
        %v1778 = vadd.f32 %v1772, %v537
        %v1779 = vadd.f32 %v1774, %v538
        %v1780 = vld [vmem:[%s6] sm:$0x3]
        %v1781 = vld [vmem:[%s7] sm:$0x3]
        %v1782 = vadd.f32 %v1776, %v1777
        %1783 = vadd.xlane.f32.xlu0 %v1782
        %v1784 = vpop.xlane.xlu0 %1783
        %v1785 = vadd.f32 %v1778, %v1779
        %1786 = vadd.xlane.f32.xlu0 %v1785
        %v1787 = vpop.xlane.xlu0 %1786
        %v1788 = vrcp.pop 256.0
        %v1789 = vmul.f32 %v1784, %v1788
        %v1790 = vmul.f32 %v1787, %v1788
        %v1791 = vsub.f32 %v1776, %v1789
        %v1792 = vsub.f32 %v1777, %v1789
        %v1793 = vsub.f32 %v1778, %v1790
        %v1794 = vsub.f32 %v1779, %v1790
        %v1795 = vmul.f32 %v1791, %v1791
        %v1796 = vmul.f32 %v1792, %v1792
        %v1797 = vmul.f32 %v1793, %v1793
        %v1798 = vmul.f32 %v1794, %v1794
        %v1799 = vadd.f32 %v1795, %v1796
        %1800 = vadd.xlane.f32.xlu0 %v1799
        %v1801 = vpop.xlane.xlu0 %1800
        %v1802 = vadd.f32 %v1797, %v1798
        %1803 = vadd.xlane.f32.xlu0 %v1802
        %v1804 = vpop.xlane.xlu0 %1803
        %v1805 = vmul.f32 %v1801, %v1788
        %v1806 = vmul.f32 %v1804, %v1788
        %v1807 = vadd.f32 %v1805, 1e-05
        %v1808 = vadd.f32 %v1806, 1e-05
        %v1809 = vrsqrt.pop %v1807
        %v1810 = vrsqrt.pop %v1808
        %v1811 = vmul.f32 %v1791, %v1809
        %v1812 = vmul.f32 %v1792, %v1809
        %v1813 = vmul.f32 %v1793, %v1810
        %v1814 = vmul.f32 %v1794, %v1810
        %v1816 = vlaneseq
        %v1817 = vshrl.u32 %v1816, 7
        %v1818 = vsub.s32 0, %v1817
        %v1819 = vrot.slane %v1780, %v1818
        %v1820 = vlaneseq
        %v1821 = vshrl.u32 %v1820, 7
        %v1822 = vsub.s32 1, %v1821
        %v1823 = vrot.slane %v1780, %v1822
        %v1826 = vmul.f32 %v1811, %v1819
        %v1827 = vmul.f32 %v1812, %v1823
        %v1828 = vmul.f32 %v1813, %v1819
        %v1829 = vmul.f32 %v1814, %v1823
        %v1831 = vlaneseq
        %v1832 = vshrl.u32 %v1831, 7
        %v1833 = vsub.s32 0, %v1832
        %v1834 = vrot.slane %v1781, %v1833
        %v1835 = vlaneseq
        %v1836 = vshrl.u32 %v1835, 7
        %v1837 = vsub.s32 1, %v1836
        %v1838 = vrot.slane %v1781, %v1837
        %v1841 = vadd.f32 %v1826, %v1834
        %v1842 = vadd.f32 %v1827, %v1838
        %v1843 = vadd.f32 %v1828, %v1834
        %v1844 = vadd.f32 %v1829, %v1838
        %v1845 = vpack.c.bf16 %v1843, %v1841
        %v1846 = vpack.c.bf16 %v1844, %v1842
        %v1847 = vld [vmem:[#allocation10] sm:$0xff]
        %v1848 = vld [vmem:[#allocation10 + $0x8] sm:$0xff]
        %v1849 = vld [vmem:[#allocation10 + $0x10] sm:$0xff]
        %v1850 = vld [vmem:[#allocation10 + $0x18] sm:$0xff]
        %v1851 = vld [vmem:[#allocation10 + $0x20] sm:$0xff]
        %v1852 = vld [vmem:[#allocation10 + $0x28] sm:$0xff]
        %v1853 = vld [vmem:[#allocation10 + $0x30] sm:$0xff]
        %v1854 = vld [vmem:[#allocation10 + $0x38] sm:$0xff]
        %v1855 = vld [vmem:[#allocation10 + $0x40] sm:$0xff]
        %v1856 = vld [vmem:[#allocation10 + $0x48] sm:$0xff]
        %v1857 = vld [vmem:[#allocation10 + $0x50] sm:$0xff]
        %v1858 = vld [vmem:[#allocation10 + $0x58] sm:$0xff]
        %v1859 = vld [vmem:[#allocation10 + $0x60] sm:$0xff]
        %v1860 = vld [vmem:[#allocation10 + $0x68] sm:$0xff]
        %v1861 = vld [vmem:[#allocation10 + $0x70] sm:$0xff]
        %v1862 = vld [vmem:[#allocation10 + $0x78] sm:$0xff]
        %v1863 = vld [vmem:[#allocation10 + $0x80] sm:$0xff]
        %v1864 = vld [vmem:[#allocation10 + $0x88] sm:$0xff]
        %v1865 = vld [vmem:[#allocation10 + $0x90] sm:$0xff]
        %v1866 = vld [vmem:[#allocation10 + $0x98] sm:$0xff]
        %v1867 = vld [vmem:[#allocation10 + $0xa0] sm:$0xff]
        %v1868 = vld [vmem:[#allocation10 + $0xa8] sm:$0xff]
        %v1869 = vld [vmem:[#allocation10 + $0xb0] sm:$0xff]
        %v1870 = vld [vmem:[#allocation10 + $0xb8] sm:$0xff]
        %v1871 = vld [vmem:[#allocation10 + $0xc0] sm:$0xff]
        %v1872 = vld [vmem:[#allocation10 + $0xc8] sm:$0xff]
        %v1873 = vld [vmem:[#allocation10 + $0xd0] sm:$0xff]
        %v1874 = vld [vmem:[#allocation10 + $0xd8] sm:$0xff]
        %v1875 = vld [vmem:[#allocation10 + $0xe0] sm:$0xff]
        %v1876 = vld [vmem:[#allocation10 + $0xe8] sm:$0xff]
        %v1877 = vld [vmem:[#allocation10 + $0xf0] sm:$0xff]
        %v1878 = vld [vmem:[#allocation10 + $0xf8] sm:$0xff]
        %v1879 = vld [vmem:[#allocation10 + $0x100] sm:$0xff]
        %v1880 = vld [vmem:[#allocation10 + $0x108] sm:$0xff]
        %v1881 = vld [vmem:[#allocation10 + $0x110] sm:$0xff]
        %v1882 = vld [vmem:[#allocation10 + $0x118] sm:$0xff]
        %v1883 = vld [vmem:[#allocation10 + $0x120] sm:$0xff]
        %v1884 = vld [vmem:[#allocation10 + $0x128] sm:$0xff]
        %v1885 = vld [vmem:[#allocation10 + $0x130] sm:$0xff]
        %v1886 = vld [vmem:[#allocation10 + $0x138] sm:$0xff]
        %v1887 = vld [vmem:[#allocation10 + $0x140] sm:$0xff]
        %v1888 = vld [vmem:[#allocation10 + $0x148] sm:$0xff]
        %v1889 = vld [vmem:[#allocation10 + $0x150] sm:$0xff]
        %v1890 = vld [vmem:[#allocation10 + $0x158] sm:$0xff]
        %v1891 = vld [vmem:[#allocation10 + $0x160] sm:$0xff]
        %v1892 = vld [vmem:[#allocation10 + $0x168] sm:$0xff]
        %v1893 = vld [vmem:[#allocation10 + $0x170] sm:$0xff]
        %v1894 = vld [vmem:[#allocation10 + $0x178] sm:$0xff]
        %v1895 = vld [vmem:[#allocation10 + $0x180] sm:$0xff]
        %v1896 = vld [vmem:[#allocation10 + $0x188] sm:$0xff]
        %v1897 = vld [vmem:[#allocation10 + $0x190] sm:$0xff]
        %v1898 = vld [vmem:[#allocation10 + $0x198] sm:$0xff]
        %v1899 = vld [vmem:[#allocation10 + $0x1a0] sm:$0xff]
        %v1900 = vld [vmem:[#allocation10 + $0x1a8] sm:$0xff]
        %v1901 = vld [vmem:[#allocation10 + $0x1b0] sm:$0xff]
        %v1902 = vld [vmem:[#allocation10 + $0x1b8] sm:$0xff]
        %v1903 = vld [vmem:[#allocation10 + $0x1c0] sm:$0xff]
        %v1904 = vld [vmem:[#allocation10 + $0x1c8] sm:$0xff]
        %v1905 = vld [vmem:[#allocation10 + $0x1d0] sm:$0xff]
        %v1906 = vld [vmem:[#allocation10 + $0x1d8] sm:$0xff]
        %v1907 = vld [vmem:[#allocation10 + $0x1e0] sm:$0xff]
        %v1908 = vld [vmem:[#allocation10 + $0x1e8] sm:$0xff]
        %v1909 = vld [vmem:[#allocation10 + $0x1f0] sm:$0xff]
        %v1910 = vld [vmem:[#allocation10 + $0x1f8] sm:$0xff]
        %v1975 = vunpack.c.l.b16 %v1847
        %v1976 = vunpack.c.h.b16 %v1847
        %v1977 = vunpack.c.l.b16 %v1848
        %v1978 = vunpack.c.h.b16 %v1848
        %v1979 = vunpack.c.l.b16 %v1849
        %v1980 = vunpack.c.h.b16 %v1849
        %v1981 = vunpack.c.l.b16 %v1850
        %v1982 = vunpack.c.h.b16 %v1850
        %v1983 = vunpack.c.l.b16 %v1851
        %v1984 = vunpack.c.h.b16 %v1851
        %v1985 = vunpack.c.l.b16 %v1852
        %v1986 = vunpack.c.h.b16 %v1852
        %v1987 = vunpack.c.l.b16 %v1853
        %v1988 = vunpack.c.h.b16 %v1853
        %v1989 = vunpack.c.l.b16 %v1854
        %v1990 = vunpack.c.h.b16 %v1854
        %v1991 = vunpack.c.l.b16 %v1855
        %v1992 = vunpack.c.h.b16 %v1855
        %v1993 = vunpack.c.l.b16 %v1856
        %v1994 = vunpack.c.h.b16 %v1856
        %v1995 = vunpack.c.l.b16 %v1857
        %v1996 = vunpack.c.h.b16 %v1857
        %v1997 = vunpack.c.l.b16 %v1858
        %v1998 = vunpack.c.h.b16 %v1858
        %v1999 = vunpack.c.l.b16 %v1859
        %v2000 = vunpack.c.h.b16 %v1859
        %v2001 = vunpack.c.l.b16 %v1860
        %v2002 = vunpack.c.h.b16 %v1860
        %v2003 = vunpack.c.l.b16 %v1861
        %v2004 = vunpack.c.h.b16 %v1861
        %v2005 = vunpack.c.l.b16 %v1862
        %v2006 = vunpack.c.h.b16 %v1862
        %v2007 = vunpack.c.l.b16 %v1863
        %v2008 = vunpack.c.h.b16 %v1863
        %v2009 = vunpack.c.l.b16 %v1864
        %v2010 = vunpack.c.h.b16 %v1864
        %v2011 = vunpack.c.l.b16 %v1865
        %v2012 = vunpack.c.h.b16 %v1865
        %v2013 = vunpack.c.l.b16 %v1866
        %v2014 = vunpack.c.h.b16 %v1866
        %v2015 = vunpack.c.l.b16 %v1867
        %v2016 = vunpack.c.h.b16 %v1867
        %v2017 = vunpack.c.l.b16 %v1868
        %v2018 = vunpack.c.h.b16 %v1868
        %v2019 = vunpack.c.l.b16 %v1869
        %v2020 = vunpack.c.h.b16 %v1869
        %v2021 = vunpack.c.l.b16 %v1870
        %v2022 = vunpack.c.h.b16 %v1870
        %v2023 = vunpack.c.l.b16 %v1871
        %v2024 = vunpack.c.h.b16 %v1871
        %v2025 = vunpack.c.l.b16 %v1872
        %v2026 = vunpack.c.h.b16 %v1872
        %v2027 = vunpack.c.l.b16 %v1873
        %v2028 = vunpack.c.h.b16 %v1873
        %v2029 = vunpack.c.l.b16 %v1874
        %v2030 = vunpack.c.h.b16 %v1874
        %v2031 = vunpack.c.l.b16 %v1875
        %v2032 = vunpack.c.h.b16 %v1875
        %v2033 = vunpack.c.l.b16 %v1876
        %v2034 = vunpack.c.h.b16 %v1876
        %v2035 = vunpack.c.l.b16 %v1877
        %v2036 = vunpack.c.h.b16 %v1877
        %v2037 = vunpack.c.l.b16 %v1878
        %v2038 = vunpack.c.h.b16 %v1878
        %v2039 = vunpack.c.l.b16 %v1879
        %v2040 = vunpack.c.h.b16 %v1879
        %v2041 = vunpack.c.l.b16 %v1880
        %v2042 = vunpack.c.h.b16 %v1880
        %v2043 = vunpack.c.l.b16 %v1881
        %v2044 = vunpack.c.h.b16 %v1881
        %v2045 = vunpack.c.l.b16 %v1882
        %v2046 = vunpack.c.h.b16 %v1882
        %v2047 = vunpack.c.l.b16 %v1883
        %v2048 = vunpack.c.h.b16 %v1883
        %v2049 = vunpack.c.l.b16 %v1884
        %v2050 = vunpack.c.h.b16 %v1884
        %v2051 = vunpack.c.l.b16 %v1885
        %v2052 = vunpack.c.h.b16 %v1885
        %v2053 = vunpack.c.l.b16 %v1886
        %v2054 = vunpack.c.h.b16 %v1886
        %v2055 = vunpack.c.l.b16 %v1887
        %v2056 = vunpack.c.h.b16 %v1887
        %v2057 = vunpack.c.l.b16 %v1888
        %v2058 = vunpack.c.h.b16 %v1888
        %v2059 = vunpack.c.l.b16 %v1889
        %v2060 = vunpack.c.h.b16 %v1889
        %v2061 = vunpack.c.l.b16 %v1890
        %v2062 = vunpack.c.h.b16 %v1890
        %v2063 = vunpack.c.l.b16 %v1891
        %v2064 = vunpack.c.h.b16 %v1891
        %v2065 = vunpack.c.l.b16 %v1892
        %v2066 = vunpack.c.h.b16 %v1892
        %v2067 = vunpack.c.l.b16 %v1893
        %v2068 = vunpack.c.h.b16 %v1893
        %v2069 = vunpack.c.l.b16 %v1894
        %v2070 = vunpack.c.h.b16 %v1894
        %v2071 = vunpack.c.l.b16 %v1895
        %v2072 = vunpack.c.h.b16 %v1895
        %v2073 = vunpack.c.l.b16 %v1896
        %v2074 = vunpack.c.h.b16 %v1896
        %v2075 = vunpack.c.l.b16 %v1897
        %v2076 = vunpack.c.h.b16 %v1897
        %v2077 = vunpack.c.l.b16 %v1898
        %v2078 = vunpack.c.h.b16 %v1898
        %v2079 = vunpack.c.l.b16 %v1899
        %v2080 = vunpack.c.h.b16 %v1899
        %v2081 = vunpack.c.l.b16 %v1900
        %v2082 = vunpack.c.h.b16 %v1900
        %v2083 = vunpack.c.l.b16 %v1901
        %v2084 = vunpack.c.h.b16 %v1901
        %v2085 = vunpack.c.l.b16 %v1902
        %v2086 = vunpack.c.h.b16 %v1902
        %v2087 = vunpack.c.l.b16 %v1903
        %v2088 = vunpack.c.h.b16 %v1903
        %v2089 = vunpack.c.l.b16 %v1904
        %v2090 = vunpack.c.h.b16 %v1904
        %v2091 = vunpack.c.l.b16 %v1905
        %v2092 = vunpack.c.h.b16 %v1905
        %v2093 = vunpack.c.l.b16 %v1906
        %v2094 = vunpack.c.h.b16 %v1906
        %v2095 = vunpack.c.l.b16 %v1907
        %v2096 = vunpack.c.h.b16 %v1907
        %v2097 = vunpack.c.l.b16 %v1908
        %v2098 = vunpack.c.h.b16 %v1908
        %v2099 = vunpack.c.l.b16 %v1909
        %v2100 = vunpack.c.h.b16 %v1909
        %v2101 = vunpack.c.l.b16 %v1910
        %v2102 = vunpack.c.h.b16 %v1910
        %v2103 = vpack.c.b16 %v1979, %v1975
        %v2104 = vpack.c.b16 %v1980, %v1976
        %v2105 = vpack.c.b16 %v1981, %v1977
        %v2106 = vpack.c.b16 %v1982, %v1978
        %v2107 = vpack.c.b16 %v1987, %v1983
        %v2108 = vpack.c.b16 %v1988, %v1984
        %v2109 = vpack.c.b16 %v1989, %v1985
        %v2110 = vpack.c.b16 %v1990, %v1986
        %v2111 = vpack.c.b16 %v1995, %v1991
        %v2112 = vpack.c.b16 %v1996, %v1992
        %v2113 = vpack.c.b16 %v1997, %v1993
        %v2114 = vpack.c.b16 %v1998, %v1994
        %v2115 = vpack.c.b16 %v2003, %v1999
        %v2116 = vpack.c.b16 %v2004, %v2000
        %v2117 = vpack.c.b16 %v2005, %v2001
        %v2118 = vpack.c.b16 %v2006, %v2002
        %v2119 = vpack.c.b16 %v2011, %v2007
        %v2120 = vpack.c.b16 %v2012, %v2008
        %v2121 = vpack.c.b16 %v2013, %v2009
        %v2122 = vpack.c.b16 %v2014, %v2010
        %v2123 = vpack.c.b16 %v2019, %v2015
        %v2124 = vpack.c.b16 %v2020, %v2016
        %v2125 = vpack.c.b16 %v2021, %v2017
        %v2126 = vpack.c.b16 %v2022, %v2018
        %v2127 = vpack.c.b16 %v2027, %v2023
        %v2128 = vpack.c.b16 %v2028, %v2024
        %v2129 = vpack.c.b16 %v2029, %v2025
        %v2130 = vpack.c.b16 %v2030, %v2026
        %v2131 = vpack.c.b16 %v2035, %v2031
        %v2132 = vpack.c.b16 %v2036, %v2032
        %v2133 = vpack.c.b16 %v2037, %v2033
        %v2134 = vpack.c.b16 %v2038, %v2034
        %v2135 = vpack.c.b16 %v2043, %v2039
        %v2136 = vpack.c.b16 %v2044, %v2040
        %v2137 = vpack.c.b16 %v2045, %v2041
        %v2138 = vpack.c.b16 %v2046, %v2042
        %v2139 = vpack.c.b16 %v2051, %v2047
        %v2140 = vpack.c.b16 %v2052, %v2048
        %v2141 = vpack.c.b16 %v2053, %v2049
        %v2142 = vpack.c.b16 %v2054, %v2050
        %v2143 = vpack.c.b16 %v2059, %v2055
        %v2144 = vpack.c.b16 %v2060, %v2056
        %v2145 = vpack.c.b16 %v2061, %v2057
        %v2146 = vpack.c.b16 %v2062, %v2058
        %v2147 = vpack.c.b16 %v2067, %v2063
        %v2148 = vpack.c.b16 %v2068, %v2064
        %v2149 = vpack.c.b16 %v2069, %v2065
        %v2150 = vpack.c.b16 %v2070, %v2066
        %v2151 = vpack.c.b16 %v2075, %v2071
        %v2152 = vpack.c.b16 %v2076, %v2072
        %v2153 = vpack.c.b16 %v2077, %v2073
        %v2154 = vpack.c.b16 %v2078, %v2074
        %v2155 = vpack.c.b16 %v2083, %v2079
        %v2156 = vpack.c.b16 %v2084, %v2080
        %v2157 = vpack.c.b16 %v2085, %v2081
        %v2158 = vpack.c.b16 %v2086, %v2082
        %v2159 = vpack.c.b16 %v2091, %v2087
        %v2160 = vpack.c.b16 %v2092, %v2088
        %v2161 = vpack.c.b16 %v2093, %v2089
        %v2162 = vpack.c.b16 %v2094, %v2090
        %v2163 = vpack.c.b16 %v2099, %v2095
        %v2164 = vpack.c.b16 %v2100, %v2096
        %v2165 = vpack.c.b16 %v2101, %v2097
        %v2166 = vpack.c.b16 %v2102, %v2098
        %2231 = vmatprep.subr.bf16.mxu0 %v2104
        %2232 = vmatpush1.bf16.msra.mxu0 %v2103
        %2233 = vmatprep.subr.bf16.mxu0 %v2108
        %2234 = vmatpush1.bf16.msra.mxu0 %v2107
        %2235 = vmatprep.subr.bf16.mxu0 %v2112
        %2236 = vmatpush1.bf16.msra.mxu0 %v2111
        %2237 = vmatprep.subr.bf16.mxu0 %v2116
        %2238 = vmatpush1.bf16.msra.mxu0 %v2115
        %2239 = vmatprep.subr.bf16.mxu0 %v2120
        %2240 = vmatpush1.bf16.msra.mxu0 %v2119
        %2241 = vmatprep.subr.bf16.mxu0 %v2124
        %2242 = vmatpush1.bf16.msra.mxu0 %v2123
        %2243 = vmatprep.subr.bf16.mxu0 %v2128
        %2244 = vmatpush1.bf16.msra.mxu0 %v2127
        %2245 = vmatprep.subr.bf16.mxu0 %v2132
        %2246 = vmatpush1.bf16.msra.mxu0 %v2131
        %2247 = vmatprep.subr.bf16.mxu0 %v2136
        %2248 = vmatpush1.bf16.msra.mxu0 %v2135
        %2249 = vmatprep.subr.bf16.mxu0 %v2140
        %2250 = vmatpush1.bf16.msra.mxu0 %v2139
        %2251 = vmatprep.subr.bf16.mxu0 %v2144
        %2252 = vmatpush1.bf16.msra.mxu0 %v2143
        %2253 = vmatprep.subr.bf16.mxu0 %v2148
        %2254 = vmatpush1.bf16.msra.mxu0 %v2147
        %2255 = vmatprep.subr.bf16.mxu0 %v2152
        %2256 = vmatpush1.bf16.msra.mxu0 %v2151
        %2257 = vmatprep.subr.bf16.mxu0 %v2156
        %2258 = vmatpush1.bf16.msra.mxu0 %v2155
        %2259 = vmatprep.subr.bf16.mxu0 %v2160
        %2260 = vmatpush1.bf16.msra.mxu0 %v2159
        %2261 = vmatprep.subr.bf16.mxu0 %v2164
        %2262 = vmatpush1.bf16.msra.mxu0 %v2163
        %2263 = vmatprep.mubr.bf16.mxu0 %v1846
        %2264 = vmatmul.mubr.bf16.gmra.mrb[0].mxu0 %v1845
        %v2265 = vpop.f32.mrb[0].mxu0
        %v2266 = vadd.f32 0.0, %v2265
        %v2267 = vpop.f32.mrb[0].mxu0
        %v2268 = vadd.f32 0.0, %v2267
        %v2269 = vpop.f32.mrb[0].mxu0
        %v2270 = vadd.f32 0.0, %v2269
        %v2271 = vpop.f32.mrb[0].mxu0
        %v2272 = vadd.f32 0.0, %v2271
        %2273 = vdwg.mxu0
        %2274 = vmatprep.subr.bf16.mxu0 %v2106
        %2275 = vmatpush1.bf16.msra.mxu0 %v2105
        %2276 = vmatprep.subr.bf16.mxu0 %v2110
        %2277 = vmatpush1.bf16.msra.mxu0 %v2109
        %2278 = vmatprep.subr.bf16.mxu0 %v2114
        %2279 = vmatpush1.bf16.msra.mxu0 %v2113
        %2280 = vmatprep.subr.bf16.mxu0 %v2118
        %2281 = vmatpush1.bf16.msra.mxu0 %v2117
        %2282 = vmatprep.subr.bf16.mxu0 %v2122
        %2283 = vmatpush1.bf16.msra.mxu0 %v2121
        %2284 = vmatprep.subr.bf16.mxu0 %v2126
        %2285 = vmatpush1.bf16.msra.mxu0 %v2125
        %2286 = vmatprep.subr.bf16.mxu0 %v2130
        %2287 = vmatpush1.bf16.msra.mxu0 %v2129
        %2288 = vmatprep.subr.bf16.mxu0 %v2134
        %2289 = vmatpush1.bf16.msra.mxu0 %v2133
        %2290 = vmatprep.subr.bf16.mxu0 %v2138
        %2291 = vmatpush1.bf16.msra.mxu0 %v2137
        %2292 = vmatprep.subr.bf16.mxu0 %v2142
        %2293 = vmatpush1.bf16.msra.mxu0 %v2141
        %2294 = vmatprep.subr.bf16.mxu0 %v2146
        %2295 = vmatpush1.bf16.msra.mxu0 %v2145
        %2296 = vmatprep.subr.bf16.mxu0 %v2150
        %2297 = vmatpush1.bf16.msra.mxu0 %v2149
        %2298 = vmatprep.subr.bf16.mxu0 %v2154
        %2299 = vmatpush1.bf16.msra.mxu0 %v2153
        %2300 = vmatprep.subr.bf16.mxu0 %v2158
        %2301 = vmatpush1.bf16.msra.mxu0 %v2157
        %2302 = vmatprep.subr.bf16.mxu0 %v2162
        %2303 = vmatpush1.bf16.msra.mxu0 %v2161
        %2304 = vmatprep.subr.bf16.mxu0 %v2166
        %2305 = vmatpush1.bf16.msra.mxu0 %v2165
        %2306 = vmatprep.mubr.bf16.mxu0 %v1846
        %2307 = vmatmul.mubr.bf16.gmra.mrb[0].mxu0 %v1845
        %v2308 = vpop.f32.mrb[0].mxu0
        %v2309 = vadd.f32 0.0, %v2308
        %v2310 = vpop.f32.mrb[0].mxu0
        %v2311 = vadd.f32 0.0, %v2310
        %v2312 = vpop.f32.mrb[0].mxu0
        %v2313 = vadd.f32 0.0, %v2312
        %v2314 = vpop.f32.mrb[0].mxu0
        %v2315 = vadd.f32 0.0, %v2314
        %2316 = vdwg.mxu0
        %v2317 = vmax.f32 %v2266, 0.0
        %v2318 = vmax.f32 %v2268, 0.0
        %v2319 = vmax.f32 %v2309, 0.0
        %v2320 = vmax.f32 %v2311, 0.0
        %v2321 = vmax.f32 %v2270, 0.0
        %v2322 = vmax.f32 %v2272, 0.0
        %v2323 = vmax.f32 %v2313, 0.0
        %v2324 = vmax.f32 %v2315, 0.0
        %v2325 = vpack.c.bf16 %v2321, %v2317
        %v2326 = vpack.c.bf16 %v2322, %v2318
        %v2327 = vpack.c.bf16 %v2323, %v2319
        %v2328 = vpack.c.bf16 %v2324, %v2320
        %v2329 = vld [vmem:[#allocation11] sm:$0xff]
        %v2330 = vld [vmem:[#allocation11 + $0x8] sm:$0xff]
        %v2331 = vld [vmem:[#allocation11 + $0x10] sm:$0xff]
        %v2332 = vld [vmem:[#allocation11 + $0x18] sm:$0xff]
        %v2333 = vld [vmem:[#allocation11 + $0x20] sm:$0xff]
        %v2334 = vld [vmem:[#allocation11 + $0x28] sm:$0xff]
        %v2335 = vld [vmem:[#allocation11 + $0x30] sm:$0xff]
        %v2336 = vld [vmem:[#allocation11 + $0x38] sm:$0xff]
        %v2337 = vld [vmem:[#allocation11 + $0x40] sm:$0xff]
        %v2338 = vld [vmem:[#allocation11 + $0x48] sm:$0xff]
        %v2339 = vld [vmem:[#allocation11 + $0x50] sm:$0xff]
        %v2340 = vld [vmem:[#allocation11 + $0x58] sm:$0xff]
        %v2341 = vld [vmem:[#allocation11 + $0x60] sm:$0xff]
        %v2342 = vld [vmem:[#allocation11 + $0x68] sm:$0xff]
        %v2343 = vld [vmem:[#allocation11 + $0x70] sm:$0xff]
        %v2344 = vld [vmem:[#allocation11 + $0x78] sm:$0xff]
        %v2345 = vld [vmem:[#allocation11 + $0x80] sm:$0xff]
        %v2346 = vld [vmem:[#allocation11 + $0x88] sm:$0xff]
        %v2347 = vld [vmem:[#allocation11 + $0x90] sm:$0xff]
        %v2348 = vld [vmem:[#allocation11 + $0x98] sm:$0xff]
        %v2349 = vld [vmem:[#allocation11 + $0xa0] sm:$0xff]
        %v2350 = vld [vmem:[#allocation11 + $0xa8] sm:$0xff]
        %v2351 = vld [vmem:[#allocation11 + $0xb0] sm:$0xff]
        %v2352 = vld [vmem:[#allocation11 + $0xb8] sm:$0xff]
        %v2353 = vld [vmem:[#allocation11 + $0xc0] sm:$0xff]
        %v2354 = vld [vmem:[#allocation11 + $0xc8] sm:$0xff]
        %v2355 = vld [vmem:[#allocation11 + $0xd0] sm:$0xff]
        %v2356 = vld [vmem:[#allocation11 + $0xd8] sm:$0xff]
        %v2357 = vld [vmem:[#allocation11 + $0xe0] sm:$0xff]
        %v2358 = vld [vmem:[#allocation11 + $0xe8] sm:$0xff]
        %v2359 = vld [vmem:[#allocation11 + $0xf0] sm:$0xff]
        %v2360 = vld [vmem:[#allocation11 + $0xf8] sm:$0xff]
        %v2361 = vld [vmem:[#allocation11 + $0x100] sm:$0xff]
        %v2362 = vld [vmem:[#allocation11 + $0x108] sm:$0xff]
        %v2363 = vld [vmem:[#allocation11 + $0x110] sm:$0xff]
        %v2364 = vld [vmem:[#allocation11 + $0x118] sm:$0xff]
        %v2365 = vld [vmem:[#allocation11 + $0x120] sm:$0xff]
        %v2366 = vld [vmem:[#allocation11 + $0x128] sm:$0xff]
        %v2367 = vld [vmem:[#allocation11 + $0x130] sm:$0xff]
        %v2368 = vld [vmem:[#allocation11 + $0x138] sm:$0xff]
        %v2369 = vld [vmem:[#allocation11 + $0x140] sm:$0xff]
        %v2370 = vld [vmem:[#allocation11 + $0x148] sm:$0xff]
        %v2371 = vld [vmem:[#allocation11 + $0x150] sm:$0xff]
        %v2372 = vld [vmem:[#allocation11 + $0x158] sm:$0xff]
        %v2373 = vld [vmem:[#allocation11 + $0x160] sm:$0xff]
        %v2374 = vld [vmem:[#allocation11 + $0x168] sm:$0xff]
        %v2375 = vld [vmem:[#allocation11 + $0x170] sm:$0xff]
        %v2376 = vld [vmem:[#allocation11 + $0x178] sm:$0xff]
        %v2377 = vld [vmem:[#allocation11 + $0x180] sm:$0xff]
        %v2378 = vld [vmem:[#allocation11 + $0x188] sm:$0xff]
        %v2379 = vld [vmem:[#allocation11 + $0x190] sm:$0xff]
        %v2380 = vld [vmem:[#allocation11 + $0x198] sm:$0xff]
        %v2381 = vld [vmem:[#allocation11 + $0x1a0] sm:$0xff]
        %v2382 = vld [vmem:[#allocation11 + $0x1a8] sm:$0xff]
        %v2383 = vld [vmem:[#allocation11 + $0x1b0] sm:$0xff]
        %v2384 = vld [vmem:[#allocation11 + $0x1b8] sm:$0xff]
        %v2385 = vld [vmem:[#allocation11 + $0x1c0] sm:$0xff]
        %v2386 = vld [vmem:[#allocation11 + $0x1c8] sm:$0xff]
        %v2387 = vld [vmem:[#allocation11 + $0x1d0] sm:$0xff]
        %v2388 = vld [vmem:[#allocation11 + $0x1d8] sm:$0xff]
        %v2389 = vld [vmem:[#allocation11 + $0x1e0] sm:$0xff]
        %v2390 = vld [vmem:[#allocation11 + $0x1e8] sm:$0xff]
        %v2391 = vld [vmem:[#allocation11 + $0x1f0] sm:$0xff]
        %v2392 = vld [vmem:[#allocation11 + $0x1f8] sm:$0xff]
        %v2457 = vunpack.c.l.b16 %v2329
        %v2458 = vunpack.c.h.b16 %v2329
        %v2459 = vunpack.c.l.b16 %v2330
        %v2460 = vunpack.c.h.b16 %v2330
        %v2461 = vunpack.c.l.b16 %v2331
        %v2462 = vunpack.c.h.b16 %v2331
        %v2463 = vunpack.c.l.b16 %v2332
        %v2464 = vunpack.c.h.b16 %v2332
        %v2465 = vunpack.c.l.b16 %v2333
        %v2466 = vunpack.c.h.b16 %v2333
        %v2467 = vunpack.c.l.b16 %v2334
        %v2468 = vunpack.c.h.b16 %v2334
        %v2469 = vunpack.c.l.b16 %v2335
        %v2470 = vunpack.c.h.b16 %v2335
        %v2471 = vunpack.c.l.b16 %v2336
        %v2472 = vunpack.c.h.b16 %v2336
        %v2473 = vunpack.c.l.b16 %v2337
        %v2474 = vunpack.c.h.b16 %v2337
        %v2475 = vunpack.c.l.b16 %v2338
        %v2476 = vunpack.c.h.b16 %v2338
        %v2477 = vunpack.c.l.b16 %v2339
        %v2478 = vunpack.c.h.b16 %v2339
        %v2479 = vunpack.c.l.b16 %v2340
        %v2480 = vunpack.c.h.b16 %v2340
        %v2481 = vunpack.c.l.b16 %v2341
        %v2482 = vunpack.c.h.b16 %v2341
        %v2483 = vunpack.c.l.b16 %v2342
        %v2484 = vunpack.c.h.b16 %v2342
        %v2485 = vunpack.c.l.b16 %v2343
        %v2486 = vunpack.c.h.b16 %v2343
        %v2487 = vunpack.c.l.b16 %v2344
        %v2488 = vunpack.c.h.b16 %v2344
        %v2489 = vunpack.c.l.b16 %v2345
        %v2490 = vunpack.c.h.b16 %v2345
        %v2491 = vunpack.c.l.b16 %v2346
        %v2492 = vunpack.c.h.b16 %v2346
        %v2493 = vunpack.c.l.b16 %v2347
        %v2494 = vunpack.c.h.b16 %v2347
        %v2495 = vunpack.c.l.b16 %v2348
        %v2496 = vunpack.c.h.b16 %v2348
        %v2497 = vunpack.c.l.b16 %v2349
        %v2498 = vunpack.c.h.b16 %v2349
        %v2499 = vunpack.c.l.b16 %v2350
        %v2500 = vunpack.c.h.b16 %v2350
        %v2501 = vunpack.c.l.b16 %v2351
        %v2502 = vunpack.c.h.b16 %v2351
        %v2503 = vunpack.c.l.b16 %v2352
        %v2504 = vunpack.c.h.b16 %v2352
        %v2505 = vunpack.c.l.b16 %v2353
        %v2506 = vunpack.c.h.b16 %v2353
        %v2507 = vunpack.c.l.b16 %v2354
        %v2508 = vunpack.c.h.b16 %v2354
        %v2509 = vunpack.c.l.b16 %v2355
        %v2510 = vunpack.c.h.b16 %v2355
        %v2511 = vunpack.c.l.b16 %v2356
        %v2512 = vunpack.c.h.b16 %v2356
        %v2513 = vunpack.c.l.b16 %v2357
        %v2514 = vunpack.c.h.b16 %v2357
        %v2515 = vunpack.c.l.b16 %v2358
        %v2516 = vunpack.c.h.b16 %v2358
        %v2517 = vunpack.c.l.b16 %v2359
        %v2518 = vunpack.c.h.b16 %v2359
        %v2519 = vunpack.c.l.b16 %v2360
        %v2520 = vunpack.c.h.b16 %v2360
        %v2521 = vunpack.c.l.b16 %v2361
        %v2522 = vunpack.c.h.b16 %v2361
        %v2523 = vunpack.c.l.b16 %v2362
        %v2524 = vunpack.c.h.b16 %v2362
        %v2525 = vunpack.c.l.b16 %v2363
        %v2526 = vunpack.c.h.b16 %v2363
        %v2527 = vunpack.c.l.b16 %v2364
        %v2528 = vunpack.c.h.b16 %v2364
        %v2529 = vunpack.c.l.b16 %v2365
        %v2530 = vunpack.c.h.b16 %v2365
        %v2531 = vunpack.c.l.b16 %v2366
        %v2532 = vunpack.c.h.b16 %v2366
        %v2533 = vunpack.c.l.b16 %v2367
        %v2534 = vunpack.c.h.b16 %v2367
        %v2535 = vunpack.c.l.b16 %v2368
        %v2536 = vunpack.c.h.b16 %v2368
        %v2537 = vunpack.c.l.b16 %v2369
        %v2538 = vunpack.c.h.b16 %v2369
        %v2539 = vunpack.c.l.b16 %v2370
        %v2540 = vunpack.c.h.b16 %v2370
        %v2541 = vunpack.c.l.b16 %v2371
        %v2542 = vunpack.c.h.b16 %v2371
        %v2543 = vunpack.c.l.b16 %v2372
        %v2544 = vunpack.c.h.b16 %v2372
        %v2545 = vunpack.c.l.b16 %v2373
        %v2546 = vunpack.c.h.b16 %v2373
        %v2547 = vunpack.c.l.b16 %v2374
        %v2548 = vunpack.c.h.b16 %v2374
        %v2549 = vunpack.c.l.b16 %v2375
        %v2550 = vunpack.c.h.b16 %v2375
        %v2551 = vunpack.c.l.b16 %v2376
        %v2552 = vunpack.c.h.b16 %v2376
        %v2553 = vunpack.c.l.b16 %v2377
        %v2554 = vunpack.c.h.b16 %v2377
        %v2555 = vunpack.c.l.b16 %v2378
        %v2556 = vunpack.c.h.b16 %v2378
        %v2557 = vunpack.c.l.b16 %v2379
        %v2558 = vunpack.c.h.b16 %v2379
        %v2559 = vunpack.c.l.b16 %v2380
        %v2560 = vunpack.c.h.b16 %v2380
        %v2561 = vunpack.c.l.b16 %v2381
        %v2562 = vunpack.c.h.b16 %v2381
        %v2563 = vunpack.c.l.b16 %v2382
        %v2564 = vunpack.c.h.b16 %v2382
        %v2565 = vunpack.c.l.b16 %v2383
        %v2566 = vunpack.c.h.b16 %v2383
        %v2567 = vunpack.c.l.b16 %v2384
        %v2568 = vunpack.c.h.b16 %v2384
        %v2569 = vunpack.c.l.b16 %v2385
        %v2570 = vunpack.c.h.b16 %v2385
        %v2571 = vunpack.c.l.b16 %v2386
        %v2572 = vunpack.c.h.b16 %v2386
        %v2573 = vunpack.c.l.b16 %v2387
        %v2574 = vunpack.c.h.b16 %v2387
        %v2575 = vunpack.c.l.b16 %v2388
        %v2576 = vunpack.c.h.b16 %v2388
        %v2577 = vunpack.c.l.b16 %v2389
        %v2578 = vunpack.c.h.b16 %v2389
        %v2579 = vunpack.c.l.b16 %v2390
        %v2580 = vunpack.c.h.b16 %v2390
        %v2581 = vunpack.c.l.b16 %v2391
        %v2582 = vunpack.c.h.b16 %v2391
        %v2583 = vunpack.c.l.b16 %v2392
        %v2584 = vunpack.c.h.b16 %v2392
        %v2585 = vpack.c.b16 %v2459, %v2457
        %v2586 = vpack.c.b16 %v2460, %v2458
        %v2587 = vpack.c.b16 %v2463, %v2461
        %v2588 = vpack.c.b16 %v2464, %v2462
        %v2589 = vpack.c.b16 %v2467, %v2465
        %v2590 = vpack.c.b16 %v2468, %v2466
        %v2591 = vpack.c.b16 %v2471, %v2469
        %v2592 = vpack.c.b16 %v2472, %v2470
        %v2593 = vpack.c.b16 %v2475, %v2473
        %v2594 = vpack.c.b16 %v2476, %v2474
        %v2595 = vpack.c.b16 %v2479, %v2477
        %v2596 = vpack.c.b16 %v2480, %v2478
        %v2597 = vpack.c.b16 %v2483, %v2481
        %v2598 = vpack.c.b16 %v2484, %v2482
        %v2599 = vpack.c.b16 %v2487, %v2485
        %v2600 = vpack.c.b16 %v2488, %v2486
        %v2601 = vpack.c.b16 %v2491, %v2489
        %v2602 = vpack.c.b16 %v2492, %v2490
        %v2603 = vpack.c.b16 %v2495, %v2493
        %v2604 = vpack.c.b16 %v2496, %v2494
        %v2605 = vpack.c.b16 %v2499, %v2497
        %v2606 = vpack.c.b16 %v2500, %v2498
        %v2607 = vpack.c.b16 %v2503, %v2501
        %v2608 = vpack.c.b16 %v2504, %v2502
        %v2609 = vpack.c.b16 %v2507, %v2505
        %v2610 = vpack.c.b16 %v2508, %v2506
        %v2611 = vpack.c.b16 %v2511, %v2509
        %v2612 = vpack.c.b16 %v2512, %v2510
        %v2613 = vpack.c.b16 %v2515, %v2513
        %v2614 = vpack.c.b16 %v2516, %v2514
        %v2615 = vpack.c.b16 %v2519, %v2517
        %v2616 = vpack.c.b16 %v2520, %v2518
        %v2617 = vpack.c.b16 %v2523, %v2521
        %v2618 = vpack.c.b16 %v2524, %v2522
        %v2619 = vpack.c.b16 %v2527, %v2525
        %v2620 = vpack.c.b16 %v2528, %v2526
        %v2621 = vpack.c.b16 %v2531, %v2529
        %v2622 = vpack.c.b16 %v2532, %v2530
        %v2623 = vpack.c.b16 %v2535, %v2533
        %v2624 = vpack.c.b16 %v2536, %v2534
        %v2625 = vpack.c.b16 %v2539, %v2537
        %v2626 = vpack.c.b16 %v2540, %v2538
        %v2627 = vpack.c.b16 %v2543, %v2541
        %v2628 = vpack.c.b16 %v2544, %v2542
        %v2629 = vpack.c.b16 %v2547, %v2545
        %v2630 = vpack.c.b16 %v2548, %v2546
        %v2631 = vpack.c.b16 %v2551, %v2549
        %v2632 = vpack.c.b16 %v2552, %v2550
        %v2633 = vpack.c.b16 %v2555, %v2553
        %v2634 = vpack.c.b16 %v2556, %v2554
        %v2635 = vpack.c.b16 %v2559, %v2557
        %v2636 = vpack.c.b16 %v2560, %v2558
        %v2637 = vpack.c.b16 %v2563, %v2561
        %v2638 = vpack.c.b16 %v2564, %v2562
        %v2639 = vpack.c.b16 %v2567, %v2565
        %v2640 = vpack.c.b16 %v2568, %v2566
        %v2641 = vpack.c.b16 %v2571, %v2569
        %v2642 = vpack.c.b16 %v2572, %v2570
        %v2643 = vpack.c.b16 %v2575, %v2573
        %v2644 = vpack.c.b16 %v2576, %v2574
        %v2645 = vpack.c.b16 %v2579, %v2577
        %v2646 = vpack.c.b16 %v2580, %v2578
        %v2647 = vpack.c.b16 %v2583, %v2581
        %v2648 = vpack.c.b16 %v2584, %v2582
        %2713 = vmatprep.subr.bf16.mxu0 %v2586
        %2714 = vmatpush1.bf16.msra.mxu0 %v2585
        %2715 = vmatprep.subr.bf16.mxu0 %v2588
        %2716 = vmatpush1.bf16.msra.mxu0 %v2587
        %2717 = vmatprep.subr.bf16.mxu0 %v2590
        %2718 = vmatpush1.bf16.msra.mxu0 %v2589
        %2719 = vmatprep.subr.bf16.mxu0 %v2592
        %2720 = vmatpush1.bf16.msra.mxu0 %v2591
        %2721 = vmatprep.subr.bf16.mxu0 %v2594
        %2722 = vmatpush1.bf16.msra.mxu0 %v2593
        %2723 = vmatprep.subr.bf16.mxu0 %v2596
        %2724 = vmatpush1.bf16.msra.mxu0 %v2595
        %2725 = vmatprep.subr.bf16.mxu0 %v2598
        %2726 = vmatpush1.bf16.msra.mxu0 %v2597
        %2727 = vmatprep.subr.bf16.mxu0 %v2600
        %2728 = vmatpush1.bf16.msra.mxu0 %v2599
        %2729 = vmatprep.subr.bf16.mxu0 %v2602
        %2730 = vmatpush1.bf16.msra.mxu0 %v2601
        %2731 = vmatprep.subr.bf16.mxu0 %v2604
        %2732 = vmatpush1.bf16.msra.mxu0 %v2603
        %2733 = vmatprep.subr.bf16.mxu0 %v2606
        %2734 = vmatpush1.bf16.msra.mxu0 %v2605
        %2735 = vmatprep.subr.bf16.mxu0 %v2608
        %2736 = vmatpush1.bf16.msra.mxu0 %v2607
        %2737 = vmatprep.subr.bf16.mxu0 %v2610
        %2738 = vmatpush1.bf16.msra.mxu0 %v2609
        %2739 = vmatprep.subr.bf16.mxu0 %v2612
        %2740 = vmatpush1.bf16.msra.mxu0 %v2611
        %2741 = vmatprep.subr.bf16.mxu0 %v2614
        %2742 = vmatpush1.bf16.msra.mxu0 %v2613
        %2743 = vmatprep.subr.bf16.mxu0 %v2616
        %2744 = vmatpush1.bf16.msra.mxu0 %v2615
        %2745 = vmatprep.mubr.bf16.mxu0 %v2326
        %2746 = vmatmul.mubr.bf16.gmra.mrb[0].mxu0 %v2325
        %v2747 = vpop.f32.mrb[0].mxu0
        %v2748 = vadd.f32 %v1841, %v2747
        %v2749 = vpop.f32.mrb[0].mxu0
        %v2750 = vadd.f32 %v1842, %v2749
        %v2751 = vpop.f32.mrb[0].mxu0
        %v2752 = vadd.f32 %v1843, %v2751
        %v2753 = vpop.f32.mrb[0].mxu0
        %v2754 = vadd.f32 %v1844, %v2753
        %2755 = vdwg.mxu0
        %2756 = vmatprep.subr.bf16.mxu0 %v2618
        %2757 = vmatpush1.bf16.msra.mxu0 %v2617
        %2758 = vmatprep.subr.bf16.mxu0 %v2620
        %2759 = vmatpush1.bf16.msra.mxu0 %v2619
        %2760 = vmatprep.subr.bf16.mxu0 %v2622
        %2761 = vmatpush1.bf16.msra.mxu0 %v2621
        %2762 = vmatprep.subr.bf16.mxu0 %v2624
        %2763 = vmatpush1.bf16.msra.mxu0 %v2623
        %2764 = vmatprep.subr.bf16.mxu0 %v2626
        %2765 = vmatpush1.bf16.msra.mxu0 %v2625
        %2766 = vmatprep.subr.bf16.mxu0 %v2628
        %2767 = vmatpush1.bf16.msra.mxu0 %v2627
        %2768 = vmatprep.subr.bf16.mxu0 %v2630
        %2769 = vmatpush1.bf16.msra.mxu0 %v2629
        %2770 = vmatprep.subr.bf16.mxu0 %v2632
        %2771 = vmatpush1.bf16.msra.mxu0 %v2631
        %2772 = vmatprep.subr.bf16.mxu0 %v2634
        %2773 = vmatpush1.bf16.msra.mxu0 %v2633
        %2774 = vmatprep.subr.bf16.mxu0 %v2636
        %2775 = vmatpush1.bf16.msra.mxu0 %v2635
        %2776 = vmatprep.subr.bf16.mxu0 %v2638
        %2777 = vmatpush1.bf16.msra.mxu0 %v2637
        %2778 = vmatprep.subr.bf16.mxu0 %v2640
        %2779 = vmatpush1.bf16.msra.mxu0 %v2639
        %2780 = vmatprep.subr.bf16.mxu0 %v2642
        %2781 = vmatpush1.bf16.msra.mxu0 %v2641
        %2782 = vmatprep.subr.bf16.mxu0 %v2644
        %2783 = vmatpush1.bf16.msra.mxu0 %v2643
        %2784 = vmatprep.subr.bf16.mxu0 %v2646
        %2785 = vmatpush1.bf16.msra.mxu0 %v2645
        %2786 = vmatprep.subr.bf16.mxu0 %v2648
        %2787 = vmatpush1.bf16.msra.mxu0 %v2647
        %2788 = vmatprep.mubr.bf16.mxu0 %v2328
        %2789 = vmatmul.mubr.bf16.gmra.mrb[0].mxu0 %v2327
        %v2790 = vpop.f32.mrb[0].mxu0
        %v2791 = vadd.f32 %v2748, %v2790
        %v2792 = vpop.f32.mrb[0].mxu0
        %v2793 = vadd.f32 %v2750, %v2792
        %v2794 = vpop.f32.mrb[0].mxu0
        %v2795 = vadd.f32 %v2752, %v2794
        %v2796 = vpop.f32.mrb[0].mxu0
        %v2797 = vadd.f32 %v2754, %v2796
        %2798 = vdwg.mxu0
        %v2799 = vld [vmem:[%s10] sm:$0x3]
        %v2800 = vld [vmem:[%s11] sm:$0x3]
        %v2801 = vadd.f32 %v2791, %v2793
        %2802 = vadd.xlane.f32.xlu0 %v2801
        %v2803 = vpop.xlane.xlu0 %2802
        %v2804 = vadd.f32 %v2795, %v2797
        %2805 = vadd.xlane.f32.xlu0 %v2804
        %v2806 = vpop.xlane.xlu0 %2805
        %v2807 = vmul.f32 %v2803, %v1788
        %v2808 = vmul.f32 %v2806, %v1788
        %v2809 = vsub.f32 %v2791, %v2807
        %v2810 = vsub.f32 %v2793, %v2807
        %v2811 = vsub.f32 %v2795, %v2808
        %v2812 = vsub.f32 %v2797, %v2808
        %v2813 = vmul.f32 %v2809, %v2809
        %v2814 = vmul.f32 %v2810, %v2810
        %v2815 = vmul.f32 %v2811, %v2811
        %v2816 = vmul.f32 %v2812, %v2812
        %v2817 = vadd.f32 %v2813, %v2814
        %2818 = vadd.xlane.f32.xlu0 %v2817
        %v2819 = vpop.xlane.xlu0 %2818
        %v2820 = vadd.f32 %v2815, %v2816
        %2821 = vadd.xlane.f32.xlu0 %v2820
        %v2822 = vpop.xlane.xlu0 %2821
        %v2823 = vmul.f32 %v2819, %v1788
        %v2824 = vmul.f32 %v2822, %v1788
        %v2825 = vadd.f32 %v2823, 1e-05
        %v2826 = vadd.f32 %v2824, 1e-05
        %v2827 = vrsqrt.pop %v2825
        %v2828 = vrsqrt.pop %v2826
        %v2829 = vmul.f32 %v2809, %v2827
        %v2830 = vmul.f32 %v2810, %v2827
        %v2831 = vmul.f32 %v2811, %v2828
        %v2832 = vmul.f32 %v2812, %v2828
        %v2834 = vlaneseq
        %v2835 = vshrl.u32 %v2834, 7
        %v2836 = vsub.s32 0, %v2835
        %v2837 = vrot.slane %v2799, %v2836
        %v2838 = vlaneseq
        %v2839 = vshrl.u32 %v2838, 7
        %v2840 = vsub.s32 1, %v2839
        %v2841 = vrot.slane %v2799, %v2840
        %v2844 = vmul.f32 %v2829, %v2837
        %v2845 = vmul.f32 %v2830, %v2841
        %v2846 = vmul.f32 %v2831, %v2837
        %v2847 = vmul.f32 %v2832, %v2841
        %v2849 = vlaneseq
        %v2850 = vshrl.u32 %v2849, 7
        %v2851 = vsub.s32 0, %v2850
        %v2852 = vrot.slane %v2800, %v2851
        %v2853 = vlaneseq
        %v2854 = vshrl.u32 %v2853, 7
        %v2855 = vsub.s32 1, %v2854
        %v2856 = vrot.slane %v2800, %v2855
        %v2859 = vadd.f32 %v2844, %v2852
        %v2860 = vadd.f32 %v2845, %v2856
        %v2861 = vadd.f32 %v2846, %v2852
        %v2862 = vadd.f32 %v2847, %v2856
        %2863 = vst [vmem:[%s529] sm:$0xff] %v2859
        %2864 = vst [vmem:[%s529 + $0x8] sm:$0xff] %v2860
        %2865 = vst [vmem:[%s529 + $0x10] sm:$0xff] %v2861
        %2866 = vst [vmem:[%s529 + $0x18] sm:$0xff] %v2862
        %s2867 = sand.u32 %s304, 1
        %s2868 = scalar_lea.sflag [#allocation4], %s2867
        %s2869 = sand.u32 %s304, 1
        %s2870 = smul.addr %s2869, 32
        %s2871 = scalar_lea.vmem [#allocation13], %s2870
        // Predicated region
        $region93: #{tpu_custom_call.1} parent=67 // pred_check
          %p2872 = pneg %p314
        $region94: #{tpu_custom_call.1} parent=67 // pred_check_branch
          %2874 = sbr.rel (%p2872) target = $region96
        $region95: #{tpu_custom_call.1} parent=67 // pred_region
          %s2876 = ssub.s32 512, 512
          %2877 = vsyncadd %s2868, %s2876
          %s2878 = smul.addr %s34, 4
          %s2879 = smul.addr %s2878, 128
          %s2880 = scalar_lea.hbm %s12, %s2879
          %s2881 = sshll.u32 %s2871, 4
          %s2882 = int_to_ptr.vmem [resolvable:$true] %s2881
          %2887 = dma.vmem_to_hbm [thread:$0]  %s2882, 512, %s2880, %s2868, 256, 256, 16
        $region96: #{tpu_custom_call.1} parent=67 // pred_fallthru
          _
      $region68: #{tpu_custom_call.1} parent=5 // pred_fallthru
        _
      %p2888 = scmp.le.s32.totalorder 2, %s29
      // Predicated region
      $region97: #{tpu_custom_call.1} parent=5 // pred_check
        %p2889 = pneg %p2888
      $region98: #{tpu_custom_call.1} parent=5 // pred_check_branch
        %2891 = sbr.rel (%p2889) target = $region100
      $region99: #{tpu_custom_call.1} parent=5 // pred_region
        %s2892 = ssub.s32 %s29, 2
        // Predicated region
        $region101: #{tpu_custom_call.1} parent=99 // pred_check
          %p2893 = pneg %p320
        $region102: #{tpu_custom_call.1} parent=99 // pred_check_branch
          %2895 = sbr.rel (%p2893) target = $region104
        $region103: #{tpu_custom_call.1} parent=99 // pred_region
          %s2896 = sand.u32 %s305, 1
          %s2897 = scalar_lea.sflag [#allocation4], %s2896
          %s2898 = sand.u32 %s305, 1
          %s2899 = smul.addr %s2898, 32
          %s2900 = scalar_lea.vmem [#allocation13], %s2899
          %2901 = dma.done %s2897, 512
        $region104: #{tpu_custom_call.1} parent=99 // pred_fallthru
          _
      $region100: #{tpu_custom_call.1} parent=5 // pred_fallthru
        _
    $region6: #{tpu_custom_call.1} parent=1 // loop_footer
      %s33 = sadd.s32 1, %s29
    $region7: #{tpu_custom_call.1} parent=1 // loop_footer_branch
      %28 = sbr.rel target = $region3
    $region8: #{tpu_custom_call.1} parent=1 // loop_exit
      _
    %2902 = vsyncpa [#allocation3], 1
    %s2903 = scalar_lea.sflag [#allocation3], 1
    %2904 = vsyncpa %s2903, 1
    %2905 = vsyncpa [#allocation6], 1
    %s2906 = scalar_lea.sflag [#allocation6], 1
    %2907 = vsyncpa %s2906, 1
    %2908 = vsyncpa [#allocation9], 1
    %2909 = vsyncpa [#allocation12], 1
    %2910 = vsyncpa [#allocation4], 1
    %s2911 = scalar_lea.sflag [#allocation4], 1
    %2912 = vsyncpa %s2911, 1

</llo_original>
